<compile_context>
chip_gen: v7x
topology: tpu7x:2x2x1
jax: 0.10.0
libtpu: 0.0.40
codegen_flags: <defaults>
</compile_context>

<pallas_src>
import jax
import jax.numpy as jnp
from jax.experimental import pallas as pl
from jax.experimental.pallas import tpu as pltpu

HIDDEN = 64  # size='tiny'


def _mlp_kernel(xT_ref,
                w1_ref, b1_ref,
                w2_ref, b2_ref,
                w3_ref, b3_ref,
                w4_ref, b4_ref,
                w5_ref, b5_ref,
                o_ref):
    # xT_ref: (D, tile_m); weights w1..w4: [out, in]; biases: [out, 1];
    # w5: [in, 1]; b5: [1, 1]; o_ref: (1, tile_m) lane-dense.
    xT = xT_ref[...]                                                   # (D, tile_m) f32

    # jnp.tanh lowers to the EUP slot; bias columns broadcast across lanes on the VPU.
    h = jnp.tanh(jnp.dot(w1_ref[...], xT,
                         preferred_element_type=jnp.float32) + b1_ref[...])
    h = jnp.tanh(jnp.dot(w2_ref[...], h,
                         preferred_element_type=jnp.float32) + b2_ref[...])
    h = jnp.tanh(jnp.dot(w3_ref[...], h,
                         preferred_element_type=jnp.float32) + b3_ref[...])
    h = jnp.tanh(jnp.dot(w4_ref[...], h,
                         preferred_element_type=jnp.float32) + b4_ref[...])

    # Width-1 output feature: VPU multiply + sublane (XLU) reduction instead of a
    # width-1 MXU matmul.  Result (1, tile_m) is lane-dense.
    out = jnp.sum(h * w5_ref[...], axis=0, keepdims=True) + b5_ref[...]

    o_ref[...] = out.astype(o_ref.dtype)


def _choose_tile_m(n, max_tile=1024):
    # Biggest power-of-two tile (<= max_tile) that still leaves a grid of length >= 2
    # (keeps both v7x TensorCores busy); big tiles amortize per-step pipeline overhead.
    tile_m = max_tile
    while tile_m > 128 and pl.cdiv(n, tile_m) < 2:
        tile_m //= 2
    return tile_m


def planets_mlp_forward(x, params, *, tile_m=None):
    """x: [N, D] float32.  params: list of (W [out,in], b [out]) in PyTorch
    nn.Linear layout.  Returns [N, 1] float32, matching torch `self.fc(x)`."""
    n, d = x.shape
    (w1, b1), (w2, b2), (w3, b3), (w4, b4), (w5, b5) = params
    assert w1.shape == (HIDDEN, d) and w5.shape == (1, HIDDEN)

    if tile_m is None:
        tile_m = _choose_tile_m(n)
    n_pad = pl.cdiv(n, tile_m) * tile_m
    if n_pad != n:
        x = jnp.pad(x, ((0, n_pad - n), (0, 0)))        # zero rows, sliced off below
    xT = x.astype(jnp.float32).T                         # (D, n_pad) feature-major

    def col(b):                                          # [out] -> [out, 1]
        return b.reshape(-1, 1).astype(jnp.float32)

    w1k, w2k, w3k, w4k = (w.astype(jnp.float32) for w in (w1, w2, w3, w4))
    w5k = w5.reshape(HIDDEN, 1).astype(jnp.float32)      # [in, 1] for the VPU dot
    b1k, b2k, b3k, b4k = col(b1), col(b2), col(b3), col(b4)
    b5k = b5.reshape(1, 1).astype(jnp.float32)

    grid = (n_pad // tile_m,)

    def const_spec(arr):
        # Full-extent block, same block every grid step (no re-DMA of weights).
        return pl.BlockSpec(arr.shape, lambda i: (0, 0))

    out = pl.pallas_call(
        _mlp_kernel,
        out_shape=jax.ShapeDtypeStruct((1, n_pad), jnp.float32),
        grid_spec=pltpu.PrefetchScalarGridSpec(
            num_scalar_prefetch=0,
            grid=grid,
            in_specs=[
                pl.BlockSpec((d, tile_m), lambda i: (0, i)),   # x tile (batch on lanes)
                const_spec(w1k), const_spec(b1k),
                const_spec(w2k), const_spec(b2k),
                const_spec(w3k), const_spec(b3k),
                const_spec(w4k), const_spec(b4k),
                const_spec(w5k), const_spec(b5k),
            ],
            out_specs=pl.BlockSpec((1, tile_m), lambda i: (0, i)),   # lane-dense slab
        ),
        compiler_params=pltpu.CompilerParams(
            dimension_semantics=("parallel",)),
    )(xT, w1k, b1k, w2k, b2k, w3k, b3k, w4k, b4k, w5k, b5k)

    return out.reshape(n_pad, 1)[:n]                     # drop padded rows


def init_params(key, nb_dimensions, hidden=HIDDEN):
    """PyTorch-style nn.Linear init in PyTorch layout: W [out,in], b [out]."""
    dims = [(nb_dimensions, hidden), (hidden, hidden), (hidden, hidden),
            (hidden, hidden), (hidden, 1)]
    params = []
    for (fan_in, fan_out) in dims:
        key, kw, kb = jax.random.split(key, 3)
        bound = 1.0 / (fan_in ** 0.5)
        w = jax.random.uniform(kw, (fan_out, fan_in), jnp.float32, -bound, bound)
        b = jax.random.uniform(kb, (fan_out,), jnp.float32, -bound, bound)
        params.append((w, b))
    return params


def reference_forward(x, params):
    h = x
    for i, (w, b) in enumerate(params):
        h = h @ w.T + b
        if i < len(params) - 1:
            h = jnp.tanh(h)
    return h


if __name__ == "__main__":
    key = jax.random.PRNGKey(0)
    nb_dimensions = 2          # 2-D planet coordinates (as in compute_residual)
    N = 900                    # e.g. a 30x30 collocation grid (exercises padding)

    key, kx = jax.random.split(key)
    x = jax.random.uniform(kx, (N, nb_dimensions), jnp.float32, 0.0, 1.0)

    params = init_params(key, nb_dimensions)

    out = planets_mlp_forward(x, params)
    out = jax.block_until_ready(out)

    ref = reference_forward(x, params)
    assert out.shape == (N, 1)
    assert jnp.allclose(out, ref, atol=1e-4, rtol=1e-4), "mismatch vs reference"

    # TODO(synk): compute_residual (torch.gradient Laplacian + planet masking) and
    # load_weights (file I/O) are not part of forward(); not ported.
    print("KERNEL_OK")
</pallas_src>

<mosaic_0001>
module attributes {stable_mosaic.version = 11 : i64} {
  func.func @_mlp_kernel(%arg0: i32, %arg1: memref<2x512xf32, #tpu.memory_space<vmem>>, %arg2: memref<64x2xf32, #tpu.memory_space<vmem>>, %arg3: memref<64x1xf32, #tpu.memory_space<vmem>>, %arg4: memref<64x64xf32, #tpu.memory_space<vmem>>, %arg5: memref<64x1xf32, #tpu.memory_space<vmem>>, %arg6: memref<64x64xf32, #tpu.memory_space<vmem>>, %arg7: memref<64x1xf32, #tpu.memory_space<vmem>>, %arg8: memref<64x64xf32, #tpu.memory_space<vmem>>, %arg9: memref<64x1xf32, #tpu.memory_space<vmem>>, %arg10: memref<64x1xf32, #tpu.memory_space<vmem>>, %arg11: memref<1x1xf32, #tpu.memory_space<vmem>>, %arg12: memref<1x512xf32, #tpu.memory_space<vmem>>) attributes {dimension_semantics = [#tpu.dimension_semantics<parallel>], iteration_bounds = array<i64: 2>, scalar_prefetch = 0 : i64, scratch_operands = 0 : i64, tpu.core_type = #tpu.core_type<tc>, window_params = [{transform_indices = @transform_0, window_bounds = array<i64: 2, 512>}, {pipeline_mode = #tpu.pipeline_mode<synchronous>, transform_indices = @transform_1, window_bounds = array<i64: 64, 2>}, {pipeline_mode = #tpu.pipeline_mode<synchronous>, transform_indices = @transform_2, window_bounds = array<i64: 64, 1>}, {pipeline_mode = #tpu.pipeline_mode<synchronous>, transform_indices = @transform_3, window_bounds = array<i64: 64, 64>}, {pipeline_mode = #tpu.pipeline_mode<synchronous>, transform_indices = @transform_4, window_bounds = array<i64: 64, 1>}, {pipeline_mode = #tpu.pipeline_mode<synchronous>, transform_indices = @transform_5, window_bounds = array<i64: 64, 64>}, {pipeline_mode = #tpu.pipeline_mode<synchronous>, transform_indices = @transform_6, window_bounds = array<i64: 64, 1>}, {pipeline_mode = #tpu.pipeline_mode<synchronous>, transform_indices = @transform_7, window_bounds = array<i64: 64, 64>}, {pipeline_mode = #tpu.pipeline_mode<synchronous>, transform_indices = @transform_8, window_bounds = array<i64: 64, 1>}, {pipeline_mode = #tpu.pipeline_mode<synchronous>, transform_indices = @transform_9, window_bounds = array<i64: 64, 1>}, {pipeline_mode = #tpu.pipeline_mode<synchronous>, transform_indices = @transform_10, window_bounds = array<i64: 1, 1>}, {transform_indices = @transform_11, window_bounds = array<i64: 1, 512>}]} {
    %c0 = arith.constant 0 : index
    %c0_0 = arith.constant 0 : index
    %0 = vector.load %arg1[%c0, %c0_0] : memref<2x512xf32, #tpu.memory_space<vmem>>, vector<2x512xf32>
    %c0_1 = arith.constant 0 : index
    %c0_2 = arith.constant 0 : index
    %1 = vector.load %arg2[%c0_1, %c0_2] : memref<64x2xf32, #tpu.memory_space<vmem>>, vector<64x2xf32>
    %cst = arith.constant dense<0.000000e+00> : vector<64x512xf32>
    %2 = tpu.matmul %1, %0, %cst {dimension_numbers = #tpu.dot_dimension_numbers<[1], [0], [0], [1], [0, 0, 1, 1], [], []>} : vector<64x2xf32>, vector<2x512xf32>, vector<64x512xf32> -> vector<64x512xf32>
    %c0_3 = arith.constant 0 : index
    %c0_4 = arith.constant 0 : index
    %3 = vector.load %arg3[%c0_3, %c0_4] : memref<64x1xf32, #tpu.memory_space<vmem>>, vector<64x1xf32>
    %4 = vector.broadcast %3 : vector<64x1xf32> to vector<64x512xf32>
    %5 = arith.addf %2, %4 : vector<64x512xf32>
    %6 = math.tanh %5 : vector<64x512xf32>
    %c0_5 = arith.constant 0 : index
    %c0_6 = arith.constant 0 : index
    %7 = vector.load %arg4[%c0_5, %c0_6] : memref<64x64xf32, #tpu.memory_space<vmem>>, vector<64x64xf32>
    %cst_7 = arith.constant dense<0.000000e+00> : vector<64x512xf32>
    %8 = tpu.matmul %7, %6, %cst_7 {dimension_numbers = #tpu.dot_dimension_numbers<[1], [0], [0], [1], [0, 0, 1, 1], [], []>} : vector<64x64xf32>, vector<64x512xf32>, vector<64x512xf32> -> vector<64x512xf32>
    %c0_8 = arith.constant 0 : index
    %c0_9 = arith.constant 0 : index
    %9 = vector.load %arg5[%c0_8, %c0_9] : memref<64x1xf32, #tpu.memory_space<vmem>>, vector<64x1xf32>
    %10 = vector.broadcast %9 : vector<64x1xf32> to vector<64x512xf32>
    %11 = arith.addf %8, %10 : vector<64x512xf32>
    %12 = math.tanh %11 : vector<64x512xf32>
    %c0_10 = arith.constant 0 : index
    %c0_11 = arith.constant 0 : index
    %13 = vector.load %arg6[%c0_10, %c0_11] : memref<64x64xf32, #tpu.memory_space<vmem>>, vector<64x64xf32>
    %cst_12 = arith.constant dense<0.000000e+00> : vector<64x512xf32>
    %14 = tpu.matmul %13, %12, %cst_12 {dimension_numbers = #tpu.dot_dimension_numbers<[1], [0], [0], [1], [0, 0, 1, 1], [], []>} : vector<64x64xf32>, vector<64x512xf32>, vector<64x512xf32> -> vector<64x512xf32>
    %c0_13 = arith.constant 0 : index
    %c0_14 = arith.constant 0 : index
    %15 = vector.load %arg7[%c0_13, %c0_14] : memref<64x1xf32, #tpu.memory_space<vmem>>, vector<64x1xf32>
    %16 = vector.broadcast %15 : vector<64x1xf32> to vector<64x512xf32>
    %17 = arith.addf %14, %16 : vector<64x512xf32>
    %18 = math.tanh %17 : vector<64x512xf32>
    %c0_15 = arith.constant 0 : index
    %c0_16 = arith.constant 0 : index
    %19 = vector.load %arg8[%c0_15, %c0_16] : memref<64x64xf32, #tpu.memory_space<vmem>>, vector<64x64xf32>
    %cst_17 = arith.constant dense<0.000000e+00> : vector<64x512xf32>
    %20 = tpu.matmul %19, %18, %cst_17 {dimension_numbers = #tpu.dot_dimension_numbers<[1], [0], [0], [1], [0, 0, 1, 1], [], []>} : vector<64x64xf32>, vector<64x512xf32>, vector<64x512xf32> -> vector<64x512xf32>
    %c0_18 = arith.constant 0 : index
    %c0_19 = arith.constant 0 : index
    %21 = vector.load %arg9[%c0_18, %c0_19] : memref<64x1xf32, #tpu.memory_space<vmem>>, vector<64x1xf32>
    %22 = vector.broadcast %21 : vector<64x1xf32> to vector<64x512xf32>
    %23 = arith.addf %20, %22 : vector<64x512xf32>
    %24 = math.tanh %23 : vector<64x512xf32>
    %c0_20 = arith.constant 0 : index
    %c0_21 = arith.constant 0 : index
    %25 = vector.load %arg10[%c0_20, %c0_21] : memref<64x1xf32, #tpu.memory_space<vmem>>, vector<64x1xf32>
    %26 = vector.broadcast %25 : vector<64x1xf32> to vector<64x512xf32>
    %27 = arith.mulf %24, %26 : vector<64x512xf32>
    %cst_22 = arith.constant dense<0.000000e+00> : vector<512xf32>
    %28 = vector.multi_reduction <add>, %27, %cst_22 [0] : vector<64x512xf32> to vector<512xf32>
    %29 = vector.shape_cast %28 : vector<512xf32> to vector<1x512xf32>
    %c0_23 = arith.constant 0 : index
    %c0_24 = arith.constant 0 : index
    %30 = vector.load %arg11[%c0_23, %c0_24] : memref<1x1xf32, #tpu.memory_space<vmem>>, vector<1x1xf32>
    %31 = vector.broadcast %30 : vector<1x1xf32> to vector<1x512xf32>
    %32 = arith.addf %29, %31 : vector<1x512xf32>
    %c0_25 = arith.constant 0 : index
    %c0_26 = arith.constant 0 : index
    %33 = vector.load %arg12[%c0_25, %c0_26] : memref<1x512xf32, #tpu.memory_space<vmem>>, vector<1x512xf32>
    tpu.vector_store %arg12[%c0_25, %c0_26], %32 {strides = array<i32>} : memref<1x512xf32, #tpu.memory_space<vmem>>, vector<1x512xf32>,
    return
  }
  func.func @transform_0(%arg0: i32) -> (i32, i32) {
    %c0_i32 = arith.constant 0 : i32
    %c0_i32_0 = arith.constant 0 : i32
    return %c0_i32, %arg0 : i32, i32
  }
  func.func @transform_1(%arg0: i32) -> (i32, i32) {
    %c0_i32 = arith.constant 0 : i32
    %c0_i32_0 = arith.constant 0 : i32
    %c0_i32_1 = arith.constant 0 : i32
    return %c0_i32, %c0_i32_0 : i32, i32
  }
  func.func @transform_2(%arg0: i32) -> (i32, i32) {
    %c0_i32 = arith.constant 0 : i32
    %c0_i32_0 = arith.constant 0 : i32
    %c0_i32_1 = arith.constant 0 : i32
    return %c0_i32, %c0_i32_0 : i32, i32
  }
  func.func @transform_3(%arg0: i32) -> (i32, i32) {
    %c0_i32 = arith.constant 0 : i32
    %c0_i32_0 = arith.constant 0 : i32
    %c0_i32_1 = arith.constant 0 : i32
    return %c0_i32, %c0_i32_0 : i32, i32
  }
  func.func @transform_4(%arg0: i32) -> (i32, i32) {
    %c0_i32 = arith.constant 0 : i32
    %c0_i32_0 = arith.constant 0 : i32
    %c0_i32_1 = arith.constant 0 : i32
    return %c0_i32, %c0_i32_0 : i32, i32
  }
  func.func @transform_5(%arg0: i32) -> (i32, i32) {
    %c0_i32 = arith.constant 0 : i32
    %c0_i32_0 = arith.constant 0 : i32
    %c0_i32_1 = arith.constant 0 : i32
    return %c0_i32, %c0_i32_0 : i32, i32
  }
  func.func @transform_6(%arg0: i32) -> (i32, i32) {
    %c0_i32 = arith.constant 0 : i32
    %c0_i32_0 = arith.constant 0 : i32
    %c0_i32_1 = arith.constant 0 : i32
    return %c0_i32, %c0_i32_0 : i32, i32
  }
  func.func @transform_7(%arg0: i32) -> (i32, i32) {
    %c0_i32 = arith.constant 0 : i32
    %c0_i32_0 = arith.constant 0 : i32
    %c0_i32_1 = arith.constant 0 : i32
    return %c0_i32, %c0_i32_0 : i32, i32
  }
  func.func @transform_8(%arg0: i32) -> (i32, i32) {
    %c0_i32 = arith.constant 0 : i32
    %c0_i32_0 = arith.constant 0 : i32
    %c0_i32_1 = arith.constant 0 : i32
    return %c0_i32, %c0_i32_0 : i32, i32
  }
  func.func @transform_9(%arg0: i32) -> (i32, i32) {
    %c0_i32 = arith.constant 0 : i32
    %c0_i32_0 = arith.constant 0 : i32
    %c0_i32_1 = arith.constant 0 : i32
    return %c0_i32, %c0_i32_0 : i32, i32
  }
  func.func @transform_10(%arg0: i32) -> (i32, i32) {
    %c0_i32 = arith.constant 0 : i32
    %c0_i32_0 = arith.constant 0 : i32
    %c0_i32_1 = arith.constant 0 : i32
    return %c0_i32, %c0_i32_0 : i32, i32
  }
  func.func @transform_11(%arg0: i32) -> (i32, i32) {
    %c0_i32 = arith.constant 0 : i32
    %c0_i32_0 = arith.constant 0 : i32
    return %c0_i32, %arg0 : i32, i32
  }
}

</mosaic_0001>

<llo_original>
// kernel: tpu_custom_call.1
$region0: #{tpu_custom_call.1}
  #allocation0 [shape = 'u32[]', space=smem, size = 0x4, offset = 0x4, fixed_abs, tag = 'smem constant byte address 0x4 - core index']
  #allocation1 [shape = 'u32[144,128]{1,0:T(1,128)}', space=vmem, size = 0x12000, scoped, tag = 'internal scratch']
  #allocation2 [shape = 'f32[1,1]{1,0:T(1,128)S(1)}', space=vmem, size = 0x200, scoped, tag = 'scoped memory for tpu_custom_call.1']
  %s0 = inlined_call_operand.vmem [shape: f32[2,1024], index: 0, kind: input, shape index: {}]
  %s1 = inlined_call_operand.vmem [shape: f32[64,2], index: 1, kind: input, shape index: {}]
  %s2 = inlined_call_operand.vmem [shape: f32[64,1], index: 2, kind: input, shape index: {}]
  %s3 = inlined_call_operand.vmem [shape: f32[64,64], index: 3, kind: input, shape index: {}]
  %s4 = inlined_call_operand.vmem [shape: f32[64,1], index: 4, kind: input, shape index: {}]
  %s5 = inlined_call_operand.vmem [shape: f32[64,64], index: 5, kind: input, shape index: {}]
  %s6 = inlined_call_operand.vmem [shape: f32[64,1], index: 6, kind: input, shape index: {}]
  %s7 = inlined_call_operand.vmem [shape: f32[64,64], index: 7, kind: input, shape index: {}]
  %s8 = inlined_call_operand.vmem [shape: f32[64,1], index: 8, kind: input, shape index: {}]
  %s9 = inlined_call_operand.vmem [shape: f32[64,1], index: 9, kind: input, shape index: {}]
  %s10 = inlined_call_operand.<no memory space> [shape: f32[1,1], index: 10, kind: input, shape index: {}]
  %s11 = inlined_call_operand.hbm [shape: f32[1,1024], index: 11, kind: output, shape index: {}]
  %s12 = sld [smem:[#allocation0]]
  $region77: #{tpu_custom_call.1} parent=0
    _
  %s14 = ssub.s32 1, %s12
  %s15 = scalar_select 0, %s14, %s12
  %v16 = vstv %s10
  %17 = vst [vmem:[#allocation2] sm:$0x1] %v16
  $region1: #{tpu_custom_call.1} parent=0
    #allocation3 [shape = 'u8[4096]{0}', space=vmem, size = 0x1000, scoped, tag = 'output window, operand 0']
    #allocation4 [shape = 's32[2]{0}', space=sflag, size = 0x8, scoped, tag = 'scoped memory for tpu_custom_call.1']
    %18 = vsyncpa [#allocation4], 0
    %s19 = scalar_lea.sflag [#allocation4], 1
    %20 = vsyncpa %s19, 0
    loop: start=0, step=1, limit=4
    $region2: #{tpu_custom_call.1} parent=1 // loop_pre_header
      _
    $region3: #{tpu_custom_call.1} parent=1 // loop_header
      %s22 = sphi 0, %s26
      %p23 = scmp.ge.s32.totalorder %s22, 4
      %s32 = sphi 0, %s34
      %s35 = sphi 0, %s32
      %s36 = sphi 0, %s35
      %s52 = sphi 0, %s36
      %s56 = sphi 0, %s56
      %s58 = sphi 0, %s56
      %s59 = sphi 0, %s58
      %s73 = sphi 0, %s59
      %s77 = sphi 0, %s77
      %s79 = sphi 0, %s77
      %s80 = sphi 0, %s79
      %s94 = sphi 0, %s80
      %s98 = sphi 0, %s98
      %s100 = sphi 0, %s98
      %s101 = sphi 0, %s100
      %s115 = sphi 0, %s101
      %s119 = sphi 0, %s119
      %s121 = sphi 0, %s119
      %s122 = sphi 0, %s121
      %s136 = sphi 0, %s122
      %s140 = sphi 0, %s140
      %s142 = sphi 0, %s140
      %s143 = sphi 0, %s142
      %s157 = sphi 0, %s143
      %s161 = sphi 0, %s161
      %s163 = sphi 0, %s161
      %s164 = sphi 0, %s163
      %s178 = sphi 0, %s164
      %s182 = sphi 0, %s182
      %s184 = sphi 0, %s182
      %s185 = sphi 0, %s184
      %s199 = sphi 0, %s185
      %s203 = sphi 0, %s203
      %s205 = sphi 0, %s203
      %s206 = sphi 0, %s205
      %s220 = sphi 0, %s206
      %s224 = sphi 0, %s224
      %s226 = sphi 0, %s224
      %s227 = sphi 0, %s226
      %s241 = sphi 0, %s227
      %s245 = sphi 0, %s245
      %s247 = sphi 0, %s245
      %s248 = sphi 0, %s247
      %s262 = sphi 0, %s248
      %s268 = sphi 0, %s270
      %s271 = sphi 0, %s268
      %s272 = sphi 0, %s271
      %s288 = sphi 0, %s272
    $region4: #{tpu_custom_call.1} parent=1 // loop_header_branch
      %25 = sbr.rel (%p23) target = $region8
    $region5: #{tpu_custom_call.1} parent=1 // loop_body
      %s27 = ssub.s32 %s22, 1
      %s28 = ssub.s32 %s22, 2
      %s29 = sadd.s32 %s22, 1
      %s30 = ssub.s32 %s22, %s29
      %p31 = scmp.eq.s32.totalorder %s30, 0
      %s33 = sadd.s32 %s32, 1
      %s34 = scalar_select %p31, %s32, %s33
      %p37 = pneg %p31
      %p38 = scmp.eq.s32.totalorder %s22, 1
      %p39 = por %p37, %p38
      %p40 = scmp.ne.s32.totalorder %s32, %s35
      %p41 = scmp.eq.s32.totalorder %s22, 0
      %p42 = por %p40, %p41
      %p43 = scmp.ne.s32.totalorder %s32, %s35
      %p44 = scmp.eq.s32.totalorder %s27, 1
      %p45 = por %p43, %p44
      %p46 = scmp.ne.s32.totalorder %s35, %s36
      %p47 = scmp.eq.s32.totalorder %s27, 0
      %p48 = por %p46, %p47
      %p49 = scmp.ne.s32.totalorder %s35, %s36
      %p50 = scmp.eq.s32.totalorder %s28, 1
      %p51 = por %p49, %p50
      %p53 = scmp.ne.s32.totalorder %s36, %s52
      %p54 = scmp.eq.s32.totalorder %s28, 0
      %p55 = por %p53, %p54
      %s57 = sadd.s32 %s56, 1
      %p60 = scmp.eq.s32.totalorder %s22, 1
      %p61 = scmp.ne.s32.totalorder %s56, %s58
      %p62 = scmp.eq.s32.totalorder %s22, 0
      %p63 = por %p61, %p62
      %p64 = scmp.ne.s32.totalorder %s56, %s58
      %p65 = scmp.eq.s32.totalorder %s27, 1
      %p66 = por %p64, %p65
      %p67 = scmp.ne.s32.totalorder %s58, %s59
      %p68 = scmp.eq.s32.totalorder %s27, 0
      %p69 = por %p67, %p68
      %p70 = scmp.ne.s32.totalorder %s58, %s59
      %p71 = scmp.eq.s32.totalorder %s28, 1
      %p72 = por %p70, %p71
      %p74 = scmp.ne.s32.totalorder %s59, %s73
      %p75 = scmp.eq.s32.totalorder %s28, 0
      %p76 = por %p74, %p75
      %s78 = sadd.s32 %s77, 1
      %p81 = scmp.eq.s32.totalorder %s22, 1
      %p82 = scmp.ne.s32.totalorder %s77, %s79
      %p83 = scmp.eq.s32.totalorder %s22, 0
      %p84 = por %p82, %p83
      %p85 = scmp.ne.s32.totalorder %s77, %s79
      %p86 = scmp.eq.s32.totalorder %s27, 1
      %p87 = por %p85, %p86
      %p88 = scmp.ne.s32.totalorder %s79, %s80
      %p89 = scmp.eq.s32.totalorder %s27, 0
      %p90 = por %p88, %p89
      %p91 = scmp.ne.s32.totalorder %s79, %s80
      %p92 = scmp.eq.s32.totalorder %s28, 1
      %p93 = por %p91, %p92
      %p95 = scmp.ne.s32.totalorder %s80, %s94
      %p96 = scmp.eq.s32.totalorder %s28, 0
      %p97 = por %p95, %p96
      %s99 = sadd.s32 %s98, 1
      %p102 = scmp.eq.s32.totalorder %s22, 1
      %p103 = scmp.ne.s32.totalorder %s98, %s100
      %p104 = scmp.eq.s32.totalorder %s22, 0
      %p105 = por %p103, %p104
      %p106 = scmp.ne.s32.totalorder %s98, %s100
      %p107 = scmp.eq.s32.totalorder %s27, 1
      %p108 = por %p106, %p107
      %p109 = scmp.ne.s32.totalorder %s100, %s101
      %p110 = scmp.eq.s32.totalorder %s27, 0
      %p111 = por %p109, %p110
      %p112 = scmp.ne.s32.totalorder %s100, %s101
      %p113 = scmp.eq.s32.totalorder %s28, 1
      %p114 = por %p112, %p113
      %p116 = scmp.ne.s32.totalorder %s101, %s115
      %p117 = scmp.eq.s32.totalorder %s28, 0
      %p118 = por %p116, %p117
      %s120 = sadd.s32 %s119, 1
      %p123 = scmp.eq.s32.totalorder %s22, 1
      %p124 = scmp.ne.s32.totalorder %s119, %s121
      %p125 = scmp.eq.s32.totalorder %s22, 0
      %p126 = por %p124, %p125
      %p127 = scmp.ne.s32.totalorder %s119, %s121
      %p128 = scmp.eq.s32.totalorder %s27, 1
      %p129 = por %p127, %p128
      %p130 = scmp.ne.s32.totalorder %s121, %s122
      %p131 = scmp.eq.s32.totalorder %s27, 0
      %p132 = por %p130, %p131
      %p133 = scmp.ne.s32.totalorder %s121, %s122
      %p134 = scmp.eq.s32.totalorder %s28, 1
      %p135 = por %p133, %p134
      %p137 = scmp.ne.s32.totalorder %s122, %s136
      %p138 = scmp.eq.s32.totalorder %s28, 0
      %p139 = por %p137, %p138
      %s141 = sadd.s32 %s140, 1
      %p144 = scmp.eq.s32.totalorder %s22, 1
      %p145 = scmp.ne.s32.totalorder %s140, %s142
      %p146 = scmp.eq.s32.totalorder %s22, 0
      %p147 = por %p145, %p146
      %p148 = scmp.ne.s32.totalorder %s140, %s142
      %p149 = scmp.eq.s32.totalorder %s27, 1
      %p150 = por %p148, %p149
      %p151 = scmp.ne.s32.totalorder %s142, %s143
      %p152 = scmp.eq.s32.totalorder %s27, 0
      %p153 = por %p151, %p152
      %p154 = scmp.ne.s32.totalorder %s142, %s143
      %p155 = scmp.eq.s32.totalorder %s28, 1
      %p156 = por %p154, %p155
      %p158 = scmp.ne.s32.totalorder %s143, %s157
      %p159 = scmp.eq.s32.totalorder %s28, 0
      %p160 = por %p158, %p159
      %s162 = sadd.s32 %s161, 1
      %p165 = scmp.eq.s32.totalorder %s22, 1
      %p166 = scmp.ne.s32.totalorder %s161, %s163
      %p167 = scmp.eq.s32.totalorder %s22, 0
      %p168 = por %p166, %p167
      %p169 = scmp.ne.s32.totalorder %s161, %s163
      %p170 = scmp.eq.s32.totalorder %s27, 1
      %p171 = por %p169, %p170
      %p172 = scmp.ne.s32.totalorder %s163, %s164
      %p173 = scmp.eq.s32.totalorder %s27, 0
      %p174 = por %p172, %p173
      %p175 = scmp.ne.s32.totalorder %s163, %s164
      %p176 = scmp.eq.s32.totalorder %s28, 1
      %p177 = por %p175, %p176
      %p179 = scmp.ne.s32.totalorder %s164, %s178
      %p180 = scmp.eq.s32.totalorder %s28, 0
      %p181 = por %p179, %p180
      %s183 = sadd.s32 %s182, 1
      %p186 = scmp.eq.s32.totalorder %s22, 1
      %p187 = scmp.ne.s32.totalorder %s182, %s184
      %p188 = scmp.eq.s32.totalorder %s22, 0
      %p189 = por %p187, %p188
      %p190 = scmp.ne.s32.totalorder %s182, %s184
      %p191 = scmp.eq.s32.totalorder %s27, 1
      %p192 = por %p190, %p191
      %p193 = scmp.ne.s32.totalorder %s184, %s185
      %p194 = scmp.eq.s32.totalorder %s27, 0
      %p195 = por %p193, %p194
      %p196 = scmp.ne.s32.totalorder %s184, %s185
      %p197 = scmp.eq.s32.totalorder %s28, 1
      %p198 = por %p196, %p197
      %p200 = scmp.ne.s32.totalorder %s185, %s199
      %p201 = scmp.eq.s32.totalorder %s28, 0
      %p202 = por %p200, %p201
      %s204 = sadd.s32 %s203, 1
      %p207 = scmp.eq.s32.totalorder %s22, 1
      %p208 = scmp.ne.s32.totalorder %s203, %s205
      %p209 = scmp.eq.s32.totalorder %s22, 0
      %p210 = por %p208, %p209
      %p211 = scmp.ne.s32.totalorder %s203, %s205
      %p212 = scmp.eq.s32.totalorder %s27, 1
      %p213 = por %p211, %p212
      %p214 = scmp.ne.s32.totalorder %s205, %s206
      %p215 = scmp.eq.s32.totalorder %s27, 0
      %p216 = por %p214, %p215
      %p217 = scmp.ne.s32.totalorder %s205, %s206
      %p218 = scmp.eq.s32.totalorder %s28, 1
      %p219 = por %p217, %p218
      %p221 = scmp.ne.s32.totalorder %s206, %s220
      %p222 = scmp.eq.s32.totalorder %s28, 0
      %p223 = por %p221, %p222
      %s225 = sadd.s32 %s224, 1
      %p228 = scmp.eq.s32.totalorder %s22, 1
      %p229 = scmp.ne.s32.totalorder %s224, %s226
      %p230 = scmp.eq.s32.totalorder %s22, 0
      %p231 = por %p229, %p230
      %p232 = scmp.ne.s32.totalorder %s224, %s226
      %p233 = scmp.eq.s32.totalorder %s27, 1
      %p234 = por %p232, %p233
      %p235 = scmp.ne.s32.totalorder %s226, %s227
      %p236 = scmp.eq.s32.totalorder %s27, 0
      %p237 = por %p235, %p236
      %p238 = scmp.ne.s32.totalorder %s226, %s227
      %p239 = scmp.eq.s32.totalorder %s28, 1
      %p240 = por %p238, %p239
      %p242 = scmp.ne.s32.totalorder %s227, %s241
      %p243 = scmp.eq.s32.totalorder %s28, 0
      %p244 = por %p242, %p243
      %s246 = sadd.s32 %s245, 1
      %p249 = scmp.eq.s32.totalorder %s22, 1
      %p250 = scmp.ne.s32.totalorder %s245, %s247
      %p251 = scmp.eq.s32.totalorder %s22, 0
      %p252 = por %p250, %p251
      %p253 = scmp.ne.s32.totalorder %s245, %s247
      %p254 = scmp.eq.s32.totalorder %s27, 1
      %p255 = por %p253, %p254
      %p256 = scmp.ne.s32.totalorder %s247, %s248
      %p257 = scmp.eq.s32.totalorder %s27, 0
      %p258 = por %p256, %p257
      %p259 = scmp.ne.s32.totalorder %s247, %s248
      %p260 = scmp.eq.s32.totalorder %s28, 1
      %p261 = por %p259, %p260
      %p263 = scmp.ne.s32.totalorder %s248, %s262
      %p264 = scmp.eq.s32.totalorder %s28, 0
      %p265 = por %p263, %p264
      %s266 = ssub.s32 %s22, %s29
      %p267 = scmp.eq.s32.totalorder %s266, 0
      %s269 = sadd.s32 %s268, 1
      %s270 = scalar_select %p267, %s268, %s269
      %p273 = pneg %p267
      %p274 = scmp.eq.s32.totalorder %s22, 1
      %p275 = por %p273, %p274
      %p276 = scmp.ne.s32.totalorder %s268, %s271
      %p277 = scmp.eq.s32.totalorder %s22, 0
      %p278 = por %p276, %p277
      %p279 = scmp.ne.s32.totalorder %s268, %s271
      %p280 = scmp.eq.s32.totalorder %s27, 1
      %p281 = por %p279, %p280
      %p282 = scmp.ne.s32.totalorder %s271, %s272
      %p283 = scmp.eq.s32.totalorder %s27, 0
      %p284 = por %p282, %p283
      %p285 = scmp.ne.s32.totalorder %s271, %s272
      %p286 = scmp.eq.s32.totalorder %s28, 1
      %p287 = por %p285, %p286
      %p289 = scmp.ne.s32.totalorder %s272, %s288
      %p290 = scmp.eq.s32.totalorder %s28, 0
      %p291 = por %p289, %p290
      %p292 = scmp.le.s32.totalorder 1, %s22
      %p293 = scmp.lt.s32.totalorder %s22, 3
      %p294 = pnand %p292, %p293
      %p295 = pneg %p294
      // Predicated region
      $region9: #{tpu_custom_call.1} parent=5 // pred_check
        _
      $region10: #{tpu_custom_call.1} parent=5 // pred_check_branch
        %297 = sbr.rel (%p294) target = $region12
      $region11: #{tpu_custom_call.1} parent=5 // pred_region
        %s298 = ssub.s32 %s22, 1
        // Predicated region
        $region13: #{tpu_custom_call.1} parent=11 // pred_check
          %p299 = pneg %p69
        $region14: #{tpu_custom_call.1} parent=11 // pred_check_branch
          %301 = sbr.rel (%p299) target = $region16
        $region15: #{tpu_custom_call.1} parent=11 // pred_region
          _
        $region16: #{tpu_custom_call.1} parent=11 // pred_fallthru
          _
        // Predicated region
        $region17: #{tpu_custom_call.1} parent=11 // pred_check
          %p302 = pneg %p90
        $region18: #{tpu_custom_call.1} parent=11 // pred_check_branch
          %304 = sbr.rel (%p302) target = $region20
        $region19: #{tpu_custom_call.1} parent=11 // pred_region
          _
        $region20: #{tpu_custom_call.1} parent=11 // pred_fallthru
          _
        // Predicated region
        $region21: #{tpu_custom_call.1} parent=11 // pred_check
          %p305 = pneg %p111
        $region22: #{tpu_custom_call.1} parent=11 // pred_check_branch
          %307 = sbr.rel (%p305) target = $region24
        $region23: #{tpu_custom_call.1} parent=11 // pred_region
          _
        $region24: #{tpu_custom_call.1} parent=11 // pred_fallthru
          _
        // Predicated region
        $region25: #{tpu_custom_call.1} parent=11 // pred_check
          %p308 = pneg %p132
        $region26: #{tpu_custom_call.1} parent=11 // pred_check_branch
          %310 = sbr.rel (%p308) target = $region28
        $region27: #{tpu_custom_call.1} parent=11 // pred_region
          _
        $region28: #{tpu_custom_call.1} parent=11 // pred_fallthru
          _
        // Predicated region
        $region29: #{tpu_custom_call.1} parent=11 // pred_check
          %p311 = pneg %p153
        $region30: #{tpu_custom_call.1} parent=11 // pred_check_branch
          %313 = sbr.rel (%p311) target = $region32
        $region31: #{tpu_custom_call.1} parent=11 // pred_region
          _
        $region32: #{tpu_custom_call.1} parent=11 // pred_fallthru
          _
        // Predicated region
        $region33: #{tpu_custom_call.1} parent=11 // pred_check
          %p314 = pneg %p174
        $region34: #{tpu_custom_call.1} parent=11 // pred_check_branch
          %316 = sbr.rel (%p314) target = $region36
        $region35: #{tpu_custom_call.1} parent=11 // pred_region
          _
        $region36: #{tpu_custom_call.1} parent=11 // pred_fallthru
          _
        // Predicated region
        $region37: #{tpu_custom_call.1} parent=11 // pred_check
          %p317 = pneg %p195
        $region38: #{tpu_custom_call.1} parent=11 // pred_check_branch
          %319 = sbr.rel (%p317) target = $region40
        $region39: #{tpu_custom_call.1} parent=11 // pred_region
          _
        $region40: #{tpu_custom_call.1} parent=11 // pred_fallthru
          _
        // Predicated region
        $region41: #{tpu_custom_call.1} parent=11 // pred_check
          %p320 = pneg %p216
        $region42: #{tpu_custom_call.1} parent=11 // pred_check_branch
          %322 = sbr.rel (%p320) target = $region44
        $region43: #{tpu_custom_call.1} parent=11 // pred_region
          _
        $region44: #{tpu_custom_call.1} parent=11 // pred_fallthru
          _
        // Predicated region
        $region45: #{tpu_custom_call.1} parent=11 // pred_check
          %p323 = pneg %p237
        $region46: #{tpu_custom_call.1} parent=11 // pred_check_branch
          %325 = sbr.rel (%p323) target = $region48
        $region47: #{tpu_custom_call.1} parent=11 // pred_region
          _
        $region48: #{tpu_custom_call.1} parent=11 // pred_fallthru
          _
        // Predicated region
        $region49: #{tpu_custom_call.1} parent=11 // pred_check
          %p326 = pneg %p258
        $region50: #{tpu_custom_call.1} parent=11 // pred_check_branch
          %328 = sbr.rel (%p326) target = $region52
        $region51: #{tpu_custom_call.1} parent=11 // pred_region
          _
        $region52: #{tpu_custom_call.1} parent=11 // pred_fallthru
          _
      $region12: #{tpu_custom_call.1} parent=5 // pred_fallthru
        _
      %p329 = scmp.lt.s32.totalorder %s22, 2
      // Predicated region
      $region53: #{tpu_custom_call.1} parent=5 // pred_check
        %p330 = pneg %p329
      $region54: #{tpu_custom_call.1} parent=5 // pred_check_branch
        %332 = sbr.rel (%p330) target = $region56
      $region55: #{tpu_custom_call.1} parent=5 // pred_region
        // Predicated region
        $region57: #{tpu_custom_call.1} parent=55 // pred_check
          %p333 = pneg %p42
        $region58: #{tpu_custom_call.1} parent=55 // pred_check_branch
          %335 = sbr.rel (%p333) target = $region60
        $region59: #{tpu_custom_call.1} parent=55 // pred_region
          %s336 = smul.u32 4, %s22
          %p337 = scmp.lt.s32.totalorder %s336, 7
          %s338 = scalar_select %p337, %s336, 7
          %s339 = smul.addr %s338, 2
          %s340 = scalar_lea.vmem %s0, %s339
          %s341 = smul.u32 4, %s22
        $region60: #{tpu_custom_call.1} parent=55 // pred_fallthru
          _
      $region56: #{tpu_custom_call.1} parent=5 // pred_fallthru
        _
      %p342 = scmp.le.s32.totalorder 1, %s22
      %p343 = scmp.lt.s32.totalorder %s22, 3
      %p344 = pnand %p342, %p343
      %p345 = pneg %p344
      // Predicated region
      $region61: #{tpu_custom_call.1} parent=5 // pred_check
        _
      $region62: #{tpu_custom_call.1} parent=5 // pred_check_branch
        %347 = sbr.rel (%p344) target = $region64
      $region63: #{tpu_custom_call.1} parent=5 // pred_region
        %s348 = ssub.s32 %s22, 1
        %s349 = smul.u32 4, %s27
        %p350 = scmp.lt.s32.totalorder %s349, 7
        %s351 = scalar_select %p350, %s349, 7
        %s352 = smul.addr %s351, 2
        %s353 = scalar_lea.vmem %s0, %s352
        %p354 = pneg %p48
        %p355 = pneg %p45
        %p356 = pneg %p69
        %p357 = pneg %p66
        %p358 = pneg %p90
        %p359 = pneg %p87
        %p360 = pneg %p111
        %p361 = pneg %p108
        %p362 = pneg %p132
        %p363 = pneg %p129
        %p364 = pneg %p153
        %p365 = pneg %p150
        %p366 = pneg %p174
        %p367 = pneg %p171
        %p368 = pneg %p195
        %p369 = pneg %p192
        %p370 = pneg %p216
        %p371 = pneg %p213
        %p372 = pneg %p237
        %p373 = pneg %p234
        %p374 = pneg %p258
        %p375 = pneg %p255
        %p376 = pneg %p284
        %p377 = pneg %p281
        %s378 = sand.u32 %s271, 1
        %s379 = scalar_lea.sflag [#allocation4], %s378
        %s380 = sand.u32 %s271, 1
        %s381 = smul.addr %s380, 4
        %s382 = scalar_lea.vmem [#allocation3], %s381
        %s383 = smul.u32 4, %s27
        %p384 = scmp.lt.s32.totalorder %s383, 7
        %s385 = scalar_select %p384, %s383, 7
        %s386 = smul.addr %s385, 2
        %s387 = scalar_lea.vmem %s0, %s386
        %s388 = smul.u32 4, %s27
        %s389 = smul.u32 4, %s27
        %v390 = vld [vmem:[%s387] sm:$0xff]
        %v391 = vld [vmem:[%s1] sm:$0xff]
        %v392 = vld [vmem:[%s1 + $0x8] sm:$0xff]
        %v393 = vld [vmem:[%s1 + $0x10] sm:$0xff]
        %v394 = vld [vmem:[%s1 + $0x18] sm:$0xff]
        %v395 = vld [vmem:[%s1 + $0x20] sm:$0xff]
        %v396 = vld [vmem:[%s1 + $0x28] sm:$0xff]
        %v397 = vld [vmem:[%s1 + $0x30] sm:$0xff]
        %v398 = vld [vmem:[%s1 + $0x38] sm:$0xff]
        %v399 = vld [vmem:[%s2] sm:$0xff]
        %v400 = vld [vmem:[%s2 + $0x8] sm:$0xff]
        %v401 = vld [vmem:[%s2 + $0x10] sm:$0xff]
        %v402 = vld [vmem:[%s2 + $0x18] sm:$0xff]
        %v403 = vld [vmem:[%s2 + $0x20] sm:$0xff]
        %v404 = vld [vmem:[%s2 + $0x28] sm:$0xff]
        %v405 = vld [vmem:[%s2 + $0x30] sm:$0xff]
        %v406 = vld [vmem:[%s2 + $0x38] sm:$0xff]
        %408 = vset.pattern.permute.xlu0 0
        %409 = vperm.xlu0 %408, %v399
        %v410 = vpop.permute.xlu0 %409
        %413 = vset.pattern.permute.xlu0 0
        %414 = vperm.xlu0 %413, %v400
        %v415 = vpop.permute.xlu0 %414
        %418 = vset.pattern.permute.xlu0 0
        %419 = vperm.xlu0 %418, %v401
        %v420 = vpop.permute.xlu0 %419
        %423 = vset.pattern.permute.xlu0 0
        %424 = vperm.xlu0 %423, %v402
        %v425 = vpop.permute.xlu0 %424
        %428 = vset.pattern.permute.xlu0 0
        %429 = vperm.xlu0 %428, %v403
        %v430 = vpop.permute.xlu0 %429
        %433 = vset.pattern.permute.xlu0 0
        %434 = vperm.xlu0 %433, %v404
        %v435 = vpop.permute.xlu0 %434
        %438 = vset.pattern.permute.xlu0 0
        %439 = vperm.xlu0 %438, %v405
        %v440 = vpop.permute.xlu0 %439
        %443 = vset.pattern.permute.xlu0 0
        %444 = vperm.xlu0 %443, %v406
        %v445 = vpop.permute.xlu0 %444
        %v448 = vcombine.high %v390, %v390
        %v450 = vunpack.c.l.s4 1983009808
        %v451 = vunpack.c.0.s8 %v450
        %v452 = vlaneseq
        %v453 = vshrl.u32 %v452, 7
        %v454 = vsub.s32 %v451, %v453
        %v455 = vrot.slane %v390, %v454
        %v457 = vunpack.c.l.s4 1983009808
        %v458 = vunpack.c.0.s8 %v457
        %v459 = vlaneseq
        %v460 = vshrl.u32 %v459, 7
        %v461 = vsub.s32 %v458, %v460
        %v462 = vrot.slane %v448, %v461
        %v463 = vcombine.high %v455, %v455
        %v464 = vcombine.high %v462, %v462
        %vm465 = vcmask 15360
        %v467 = vsel %vm465, %v391, 0
        %v470 = vsel %vm465, %v392, 0
        %v473 = vsel %vm465, %v393, 0
        %v476 = vsel %vm465, %v394, 0
        %v479 = vsel %vm465, %v395, 0
        %v482 = vsel %vm465, %v396, 0
        %v485 = vsel %vm465, %v397, 0
        %v488 = vsel %vm465, %v398, 0
        %vm490 = vcmask 1041408
        %v491 = vsel %vm490, %v455, 0
        %v493 = vsel %vm490, %v463, 0
        %v495 = vsel %vm490, %v462, 0
        %v497 = vsel %vm490, %v464, 0
        %499 = vmatprep.subr.mxu0 %v493
        %500 = vmatpush1.msra.mxu0 %v491
        %501 = vmatprep.subr.mxu0 0.0
        %502 = vmatpush1.msra.mxu0 0.0
        %503 = vmatprep.subr.mxu0 0.0
        %504 = vmatpush1.msra.mxu0 0.0
        %505 = vmatprep.subr.mxu0 0.0
        %506 = vmatpush1.msra.mxu0 0.0
        %507 = vmatprep.subr.mxu0 0.0
        %508 = vmatpush1.msra.mxu0 0.0
        %509 = vmatprep.subr.mxu0 0.0
        %510 = vmatpush1.msra.mxu0 0.0
        %511 = vmatprep.subr.mxu0 0.0
        %512 = vmatpush1.msra.mxu0 0.0
        %513 = vmatprep.subr.mxu0 0.0
        %514 = vmatpush1.msra.mxu0 0.0
        %515 = vmatprep.subr.mxu0 0.0
        %516 = vmatpush1.msra.mxu0 0.0
        %517 = vmatprep.subr.mxu0 0.0
        %518 = vmatpush1.msra.mxu0 0.0
        %519 = vmatprep.subr.mxu0 0.0
        %520 = vmatpush1.msra.mxu0 0.0
        %521 = vmatprep.subr.mxu0 0.0
        %522 = vmatpush1.msra.mxu0 0.0
        %523 = vmatprep.subr.mxu0 0.0
        %524 = vmatpush1.msra.mxu0 0.0
        %525 = vmatprep.subr.mxu0 0.0
        %526 = vmatpush1.msra.mxu0 0.0
        %527 = vmatprep.subr.mxu0 0.0
        %528 = vmatpush1.msra.mxu0 0.0
        %529 = vmatprep.subr.mxu0 0.0
        %530 = vmatpush1.msra.mxu0 0.0
        %531 = vmatprep.subr.mxu0 0.0
        %532 = vmatpush1.msra.mxu0 0.0
        %533 = vmatprep.subr.mxu0 0.0
        %534 = vmatpush1.msra.mxu0 0.0
        %535 = vmatprep.subr.mxu0 0.0
        %536 = vmatpush1.msra.mxu0 0.0
        %537 = vmatprep.subr.mxu0 0.0
        %538 = vmatpush1.msra.mxu0 0.0
        %539 = vmatprep.subr.mxu0 0.0
        %540 = vmatpush1.msra.mxu0 0.0
        %541 = vmatprep.subr.mxu0 0.0
        %542 = vmatpush1.msra.mxu0 0.0
        %543 = vmatprep.subr.mxu0 0.0
        %544 = vmatpush1.msra.mxu0 0.0
        %545 = vmatprep.subr.mxu0 0.0
        %546 = vmatpush1.msra.mxu0 0.0
        %547 = vmatprep.subr.mxu0 0.0
        %548 = vmatpush1.msra.mxu0 0.0
        %549 = vmatprep.subr.mxu0 0.0
        %550 = vmatpush1.msra.mxu0 0.0
        %551 = vmatprep.subr.mxu0 0.0
        %552 = vmatpush1.msra.mxu0 0.0
        %553 = vmatprep.subr.mxu0 0.0
        %554 = vmatpush1.msra.mxu0 0.0
        %555 = vmatprep.subr.mxu0 0.0
        %556 = vmatpush1.msra.mxu0 0.0
        %557 = vmatprep.subr.mxu0 0.0
        %558 = vmatpush1.msra.mxu0 0.0
        %559 = vmatprep.subr.mxu0 0.0
        %560 = vmatpush1.msra.mxu0 0.0
        %561 = vmatprep.subr.mxu0 0.0
        %562 = vmatpush1.msra.mxu0 0.0
        %563 = vmatprep.mubr.f32.mxu0 0.0
        %564 = vmatmul.mubr.f32.gmra.mrb[0].mxu0 %v467
        %v565 = vpop.f32.mrb[0].mxu0
        %v566 = vadd.f32 %v410, %v565
        %v567 = vpop.f32.mrb[0].mxu0
        %v568 = vadd.f32 %v410, %v567
        %569 = vmatprep.mubr.f32.mxu0 0.0
        %570 = vmatmul.mubr.f32.gmra.mrb[0].mxu0 %v470
        %v571 = vpop.f32.mrb[0].mxu0
        %v572 = vadd.f32 %v415, %v571
        %v573 = vpop.f32.mrb[0].mxu0
        %v574 = vadd.f32 %v415, %v573
        %575 = vmatprep.mubr.f32.mxu0 0.0
        %576 = vmatmul.mubr.f32.gmra.mrb[0].mxu0 %v473
        %v577 = vpop.f32.mrb[0].mxu0
        %v578 = vadd.f32 %v420, %v577
        %v579 = vpop.f32.mrb[0].mxu0
        %v580 = vadd.f32 %v420, %v579
        %581 = vmatprep.mubr.f32.mxu0 0.0
        %582 = vmatmul.mubr.f32.gmra.mrb[0].mxu0 %v476
        %v583 = vpop.f32.mrb[0].mxu0
        %v584 = vadd.f32 %v425, %v583
        %v585 = vpop.f32.mrb[0].mxu0
        %v586 = vadd.f32 %v425, %v585
        %587 = vmatprep.mubr.f32.mxu0 0.0
        %588 = vmatmul.mubr.f32.gmra.mrb[0].mxu0 %v479
        %v589 = vpop.f32.mrb[0].mxu0
        %v590 = vadd.f32 %v430, %v589
        %v591 = vpop.f32.mrb[0].mxu0
        %v592 = vadd.f32 %v430, %v591
        %593 = vmatprep.mubr.f32.mxu0 0.0
        %594 = vmatmul.mubr.f32.gmra.mrb[0].mxu0 %v482
        %v595 = vpop.f32.mrb[0].mxu0
        %v596 = vadd.f32 %v435, %v595
        %v597 = vpop.f32.mrb[0].mxu0
        %v598 = vadd.f32 %v435, %v597
        %599 = vmatprep.mubr.f32.mxu0 0.0
        %600 = vmatmul.mubr.f32.gmra.mrb[0].mxu0 %v485
        %v601 = vpop.f32.mrb[0].mxu0
        %v602 = vadd.f32 %v440, %v601
        %v603 = vpop.f32.mrb[0].mxu0
        %v604 = vadd.f32 %v440, %v603
        %605 = vmatprep.mubr.f32.mxu0 0.0
        %606 = vmatmul.mubr.f32.gmra.mrb[0].mxu0 %v488
        %v607 = vpop.f32.mrb[0].mxu0
        %v608 = vadd.f32 %v445, %v607
        %v609 = vpop.f32.mrb[0].mxu0
        %v610 = vadd.f32 %v445, %v609
        %611 = vdwg.mxu0
        %612 = vmatprep.subr.mxu0 %v497
        %613 = vmatpush1.msra.mxu0 %v495
        %614 = vmatprep.subr.mxu0 0.0
        %615 = vmatpush1.msra.mxu0 0.0
        %616 = vmatprep.subr.mxu0 0.0
        %617 = vmatpush1.msra.mxu0 0.0
        %618 = vmatprep.subr.mxu0 0.0
        %619 = vmatpush1.msra.mxu0 0.0
        %620 = vmatprep.subr.mxu0 0.0
        %621 = vmatpush1.msra.mxu0 0.0
        %622 = vmatprep.subr.mxu0 0.0
        %623 = vmatpush1.msra.mxu0 0.0
        %624 = vmatprep.subr.mxu0 0.0
        %625 = vmatpush1.msra.mxu0 0.0
        %626 = vmatprep.subr.mxu0 0.0
        %627 = vmatpush1.msra.mxu0 0.0
        %628 = vmatprep.subr.mxu0 0.0
        %629 = vmatpush1.msra.mxu0 0.0
        %630 = vmatprep.subr.mxu0 0.0
        %631 = vmatpush1.msra.mxu0 0.0
        %632 = vmatprep.subr.mxu0 0.0
        %633 = vmatpush1.msra.mxu0 0.0
        %634 = vmatprep.subr.mxu0 0.0
        %635 = vmatpush1.msra.mxu0 0.0
        %636 = vmatprep.subr.mxu0 0.0
        %637 = vmatpush1.msra.mxu0 0.0
        %638 = vmatprep.subr.mxu0 0.0
        %639 = vmatpush1.msra.mxu0 0.0
        %640 = vmatprep.subr.mxu0 0.0
        %641 = vmatpush1.msra.mxu0 0.0
        %642 = vmatprep.subr.mxu0 0.0
        %643 = vmatpush1.msra.mxu0 0.0
        %644 = vmatprep.subr.mxu0 0.0
        %645 = vmatpush1.msra.mxu0 0.0
        %646 = vmatprep.subr.mxu0 0.0
        %647 = vmatpush1.msra.mxu0 0.0
        %648 = vmatprep.subr.mxu0 0.0
        %649 = vmatpush1.msra.mxu0 0.0
        %650 = vmatprep.subr.mxu0 0.0
        %651 = vmatpush1.msra.mxu0 0.0
        %652 = vmatprep.subr.mxu0 0.0
        %653 = vmatpush1.msra.mxu0 0.0
        %654 = vmatprep.subr.mxu0 0.0
        %655 = vmatpush1.msra.mxu0 0.0
        %656 = vmatprep.subr.mxu0 0.0
        %657 = vmatpush1.msra.mxu0 0.0
        %658 = vmatprep.subr.mxu0 0.0
        %659 = vmatpush1.msra.mxu0 0.0
        %660 = vmatprep.subr.mxu0 0.0
        %661 = vmatpush1.msra.mxu0 0.0
        %662 = vmatprep.subr.mxu0 0.0
        %663 = vmatpush1.msra.mxu0 0.0
        %664 = vmatprep.subr.mxu0 0.0
        %665 = vmatpush1.msra.mxu0 0.0
        %666 = vmatprep.subr.mxu0 0.0
        %667 = vmatpush1.msra.mxu0 0.0
        %668 = vmatprep.subr.mxu0 0.0
        %669 = vmatpush1.msra.mxu0 0.0
        %670 = vmatprep.subr.mxu0 0.0
        %671 = vmatpush1.msra.mxu0 0.0
        %672 = vmatprep.subr.mxu0 0.0
        %673 = vmatpush1.msra.mxu0 0.0
        %674 = vmatprep.subr.mxu0 0.0
        %675 = vmatpush1.msra.mxu0 0.0
        %676 = vmatprep.mubr.f32.mxu0 0.0
        %677 = vmatmul.mubr.f32.gmra.mrb[0].mxu0 %v467
        %v678 = vpop.f32.mrb[0].mxu0
        %v679 = vadd.f32 %v410, %v678
        %v680 = vpop.f32.mrb[0].mxu0
        %v681 = vadd.f32 %v410, %v680
        %682 = vmatprep.mubr.f32.mxu0 0.0
        %683 = vmatmul.mubr.f32.gmra.mrb[0].mxu0 %v470
        %v684 = vpop.f32.mrb[0].mxu0
        %v685 = vadd.f32 %v415, %v684
        %v686 = vpop.f32.mrb[0].mxu0
        %v687 = vadd.f32 %v415, %v686
        %688 = vmatprep.mubr.f32.mxu0 0.0
        %689 = vmatmul.mubr.f32.gmra.mrb[0].mxu0 %v473
        %v690 = vpop.f32.mrb[0].mxu0
        %v691 = vadd.f32 %v420, %v690
        %v692 = vpop.f32.mrb[0].mxu0
        %v693 = vadd.f32 %v420, %v692
        %694 = vmatprep.mubr.f32.mxu0 0.0
        %695 = vmatmul.mubr.f32.gmra.mrb[0].mxu0 %v476
        %v696 = vpop.f32.mrb[0].mxu0
        %v697 = vadd.f32 %v425, %v696
        %v698 = vpop.f32.mrb[0].mxu0
        %v699 = vadd.f32 %v425, %v698
        %700 = vmatprep.mubr.f32.mxu0 0.0
        %701 = vmatmul.mubr.f32.gmra.mrb[0].mxu0 %v479
        %v702 = vpop.f32.mrb[0].mxu0
        %v703 = vadd.f32 %v430, %v702
        %v704 = vpop.f32.mrb[0].mxu0
        %v705 = vadd.f32 %v430, %v704
        %706 = vmatprep.mubr.f32.mxu0 0.0
        %707 = vmatmul.mubr.f32.gmra.mrb[0].mxu0 %v482
        %v708 = vpop.f32.mrb[0].mxu0
        %v709 = vadd.f32 %v435, %v708
        %v710 = vpop.f32.mrb[0].mxu0
        %v711 = vadd.f32 %v435, %v710
        %712 = vmatprep.mubr.f32.mxu0 0.0
        %713 = vmatmul.mubr.f32.gmra.mrb[0].mxu0 %v485
        %v714 = vpop.f32.mrb[0].mxu0
        %v715 = vadd.f32 %v440, %v714
        %v716 = vpop.f32.mrb[0].mxu0
        %v717 = vadd.f32 %v440, %v716
        %718 = vmatprep.mubr.f32.mxu0 0.0
        %719 = vmatmul.mubr.f32.gmra.mrb[0].mxu0 %v488
        %v720 = vpop.f32.mrb[0].mxu0
        %v721 = vadd.f32 %v445, %v720
        %v722 = vpop.f32.mrb[0].mxu0
        %v723 = vadd.f32 %v445, %v722
        %724 = vdwg.mxu0
        %v725 = vtanh.pop %v566
        %v726 = vtanh.pop %v568
        %v727 = vtanh.pop %v679
        %v728 = vtanh.pop %v681
        %v729 = vtanh.pop %v572
        %v730 = vtanh.pop %v574
        %v731 = vtanh.pop %v685
        %v732 = vtanh.pop %v687
        %v733 = vtanh.pop %v578
        %v734 = vtanh.pop %v580
        %v735 = vtanh.pop %v691
        %v736 = vtanh.pop %v693
        %v737 = vtanh.pop %v584
        %v738 = vtanh.pop %v586
        %v739 = vtanh.pop %v697
        %v740 = vtanh.pop %v699
        %v741 = vtanh.pop %v590
        %v742 = vtanh.pop %v592
        %v743 = vtanh.pop %v703
        %v744 = vtanh.pop %v705
        %v745 = vtanh.pop %v596
        %v746 = vtanh.pop %v598
        %v747 = vtanh.pop %v709
        %v748 = vtanh.pop %v711
        %v749 = vtanh.pop %v602
        %v750 = vtanh.pop %v604
        %v751 = vtanh.pop %v715
        %v752 = vtanh.pop %v717
        %v753 = vtanh.pop %v608
        %v754 = vtanh.pop %v610
        %v755 = vtanh.pop %v721
        %v756 = vtanh.pop %v723
        %v757 = vld [vmem:[%s3] sm:$0xff]
        %v758 = vld [vmem:[%s3 + $0x8] sm:$0xff]
        %v759 = vld [vmem:[%s3 + $0x10] sm:$0xff]
        %v760 = vld [vmem:[%s3 + $0x18] sm:$0xff]
        %v761 = vld [vmem:[%s3 + $0x20] sm:$0xff]
        %v762 = vld [vmem:[%s3 + $0x28] sm:$0xff]
        %v763 = vld [vmem:[%s3 + $0x30] sm:$0xff]
        %v764 = vld [vmem:[%s3 + $0x38] sm:$0xff]
        %v765 = vld [vmem:[%s4] sm:$0xff]
        %v766 = vld [vmem:[%s4 + $0x8] sm:$0xff]
        %v767 = vld [vmem:[%s4 + $0x10] sm:$0xff]
        %v768 = vld [vmem:[%s4 + $0x18] sm:$0xff]
        %v769 = vld [vmem:[%s4 + $0x20] sm:$0xff]
        %v770 = vld [vmem:[%s4 + $0x28] sm:$0xff]
        %v771 = vld [vmem:[%s4 + $0x30] sm:$0xff]
        %v772 = vld [vmem:[%s4 + $0x38] sm:$0xff]
        %774 = vset.pattern.permute.xlu0 0
        %775 = vperm.xlu0 %774, %v765
        %v776 = vpop.permute.xlu0 %775
        %779 = vset.pattern.permute.xlu0 0
        %780 = vperm.xlu0 %779, %v766
        %v781 = vpop.permute.xlu0 %780
        %784 = vset.pattern.permute.xlu0 0
        %785 = vperm.xlu0 %784, %v767
        %v786 = vpop.permute.xlu0 %785
        %789 = vset.pattern.permute.xlu0 0
        %790 = vperm.xlu0 %789, %v768
        %v791 = vpop.permute.xlu0 %790
        %794 = vset.pattern.permute.xlu0 0
        %795 = vperm.xlu0 %794, %v769
        %v796 = vpop.permute.xlu0 %795
        %799 = vset.pattern.permute.xlu0 0
        %800 = vperm.xlu0 %799, %v770
        %v801 = vpop.permute.xlu0 %800
        %804 = vset.pattern.permute.xlu0 0
        %805 = vperm.xlu0 %804, %v771
        %v806 = vpop.permute.xlu0 %805
        %809 = vset.pattern.permute.xlu0 0
        %810 = vperm.xlu0 %809, %v772
        %v811 = vpop.permute.xlu0 %810
        %vm813 = vcmask 523264
        %v815 = vsel %vm813, %v757, 0
        %v818 = vsel %vm813, %v758, 0
        %v821 = vsel %vm813, %v759, 0
        %v824 = vsel %vm813, %v760, 0
        %v827 = vsel %vm813, %v761, 0
        %v830 = vsel %vm813, %v762, 0
        %v833 = vsel %vm813, %v763, 0
        %v836 = vsel %vm813, %v764, 0
        %838 = vmatprep.subr.mxu0 %v726
        %839 = vmatpush1.msra.mxu0 %v725
        %840 = vmatprep.subr.mxu0 %v730
        %841 = vmatpush1.msra.mxu0 %v729
        %842 = vmatprep.subr.mxu0 %v734
        %843 = vmatpush1.msra.mxu0 %v733
        %844 = vmatprep.subr.mxu0 %v738
        %845 = vmatpush1.msra.mxu0 %v737
        %846 = vmatprep.subr.mxu0 %v742
        %847 = vmatpush1.msra.mxu0 %v741
        %848 = vmatprep.subr.mxu0 %v746
        %849 = vmatpush1.msra.mxu0 %v745
        %850 = vmatprep.subr.mxu0 %v750
        %851 = vmatpush1.msra.mxu0 %v749
        %852 = vmatprep.subr.mxu0 %v754
        %853 = vmatpush1.msra.mxu0 %v753
        %854 = vmatprep.subr.mxu0 0.0
        %855 = vmatpush1.msra.mxu0 0.0
        %856 = vmatprep.subr.mxu0 0.0
        %857 = vmatpush1.msra.mxu0 0.0
        %858 = vmatprep.subr.mxu0 0.0
        %859 = vmatpush1.msra.mxu0 0.0
        %860 = vmatprep.subr.mxu0 0.0
        %861 = vmatpush1.msra.mxu0 0.0
        %862 = vmatprep.subr.mxu0 0.0
        %863 = vmatpush1.msra.mxu0 0.0
        %864 = vmatprep.subr.mxu0 0.0
        %865 = vmatpush1.msra.mxu0 0.0
        %866 = vmatprep.subr.mxu0 0.0
        %867 = vmatpush1.msra.mxu0 0.0
        %868 = vmatprep.subr.mxu0 0.0
        %869 = vmatpush1.msra.mxu0 0.0
        %870 = vmatprep.subr.mxu0 0.0
        %871 = vmatpush1.msra.mxu0 0.0
        %872 = vmatprep.subr.mxu0 0.0
        %873 = vmatpush1.msra.mxu0 0.0
        %874 = vmatprep.subr.mxu0 0.0
        %875 = vmatpush1.msra.mxu0 0.0
        %876 = vmatprep.subr.mxu0 0.0
        %877 = vmatpush1.msra.mxu0 0.0
        %878 = vmatprep.subr.mxu0 0.0
        %879 = vmatpush1.msra.mxu0 0.0
        %880 = vmatprep.subr.mxu0 0.0
        %881 = vmatpush1.msra.mxu0 0.0
        %882 = vmatprep.subr.mxu0 0.0
        %883 = vmatpush1.msra.mxu0 0.0
        %884 = vmatprep.subr.mxu0 0.0
        %885 = vmatpush1.msra.mxu0 0.0
        %886 = vmatprep.subr.mxu0 0.0
        %887 = vmatpush1.msra.mxu0 0.0
        %888 = vmatprep.subr.mxu0 0.0
        %889 = vmatpush1.msra.mxu0 0.0
        %890 = vmatprep.subr.mxu0 0.0
        %891 = vmatpush1.msra.mxu0 0.0
        %892 = vmatprep.subr.mxu0 0.0
        %893 = vmatpush1.msra.mxu0 0.0
        %894 = vmatprep.subr.mxu0 0.0
        %895 = vmatpush1.msra.mxu0 0.0
        %896 = vmatprep.subr.mxu0 0.0
        %897 = vmatpush1.msra.mxu0 0.0
        %898 = vmatprep.subr.mxu0 0.0
        %899 = vmatpush1.msra.mxu0 0.0
        %900 = vmatprep.subr.mxu0 0.0
        %901 = vmatpush1.msra.mxu0 0.0
        %902 = vmatprep.mubr.f32.mxu0 0.0
        %903 = vmatmul.mubr.f32.gmra.mrb[0].mxu0 %v815
        %v904 = vpop.f32.mrb[0].mxu0
        %v905 = vadd.f32 %v776, %v904
        %v906 = vpop.f32.mrb[0].mxu0
        %v907 = vadd.f32 %v776, %v906
        %908 = vmatprep.mubr.f32.mxu0 0.0
        %909 = vmatmul.mubr.f32.gmra.mrb[0].mxu0 %v818
        %v910 = vpop.f32.mrb[0].mxu0
        %v911 = vadd.f32 %v781, %v910
        %v912 = vpop.f32.mrb[0].mxu0
        %v913 = vadd.f32 %v781, %v912
        %914 = vmatprep.mubr.f32.mxu0 0.0
        %915 = vmatmul.mubr.f32.gmra.mrb[0].mxu0 %v821
        %v916 = vpop.f32.mrb[0].mxu0
        %v917 = vadd.f32 %v786, %v916
        %v918 = vpop.f32.mrb[0].mxu0
        %v919 = vadd.f32 %v786, %v918
        %920 = vmatprep.mubr.f32.mxu0 0.0
        %921 = vmatmul.mubr.f32.gmra.mrb[0].mxu0 %v824
        %v922 = vpop.f32.mrb[0].mxu0
        %v923 = vadd.f32 %v791, %v922
        %v924 = vpop.f32.mrb[0].mxu0
        %v925 = vadd.f32 %v791, %v924
        %926 = vmatprep.mubr.f32.mxu0 0.0
        %927 = vmatmul.mubr.f32.gmra.mrb[0].mxu0 %v827
        %v928 = vpop.f32.mrb[0].mxu0
        %v929 = vadd.f32 %v796, %v928
        %v930 = vpop.f32.mrb[0].mxu0
        %v931 = vadd.f32 %v796, %v930
        %932 = vmatprep.mubr.f32.mxu0 0.0
        %933 = vmatmul.mubr.f32.gmra.mrb[0].mxu0 %v830
        %v934 = vpop.f32.mrb[0].mxu0
        %v935 = vadd.f32 %v801, %v934
        %v936 = vpop.f32.mrb[0].mxu0
        %v937 = vadd.f32 %v801, %v936
        %938 = vmatprep.mubr.f32.mxu0 0.0
        %939 = vmatmul.mubr.f32.gmra.mrb[0].mxu0 %v833
        %v940 = vpop.f32.mrb[0].mxu0
        %v941 = vadd.f32 %v806, %v940
        %v942 = vpop.f32.mrb[0].mxu0
        %v943 = vadd.f32 %v806, %v942
        %944 = vmatprep.mubr.f32.mxu0 0.0
        %945 = vmatmul.mubr.f32.gmra.mrb[0].mxu0 %v836
        %v946 = vpop.f32.mrb[0].mxu0
        %v947 = vadd.f32 %v811, %v946
        %v948 = vpop.f32.mrb[0].mxu0
        %v949 = vadd.f32 %v811, %v948
        %950 = vdwg.mxu0
        %951 = vmatprep.subr.mxu0 %v728
        %952 = vmatpush1.msra.mxu0 %v727
        %953 = vmatprep.subr.mxu0 %v732
        %954 = vmatpush1.msra.mxu0 %v731
        %955 = vmatprep.subr.mxu0 %v736
        %956 = vmatpush1.msra.mxu0 %v735
        %957 = vmatprep.subr.mxu0 %v740
        %958 = vmatpush1.msra.mxu0 %v739
        %959 = vmatprep.subr.mxu0 %v744
        %960 = vmatpush1.msra.mxu0 %v743
        %961 = vmatprep.subr.mxu0 %v748
        %962 = vmatpush1.msra.mxu0 %v747
        %963 = vmatprep.subr.mxu0 %v752
        %964 = vmatpush1.msra.mxu0 %v751
        %965 = vmatprep.subr.mxu0 %v756
        %966 = vmatpush1.msra.mxu0 %v755
        %967 = vmatprep.subr.mxu0 0.0
        %968 = vmatpush1.msra.mxu0 0.0
        %969 = vmatprep.subr.mxu0 0.0
        %970 = vmatpush1.msra.mxu0 0.0
        %971 = vmatprep.subr.mxu0 0.0
        %972 = vmatpush1.msra.mxu0 0.0
        %973 = vmatprep.subr.mxu0 0.0
        %974 = vmatpush1.msra.mxu0 0.0
        %975 = vmatprep.subr.mxu0 0.0
        %976 = vmatpush1.msra.mxu0 0.0
        %977 = vmatprep.subr.mxu0 0.0
        %978 = vmatpush1.msra.mxu0 0.0
        %979 = vmatprep.subr.mxu0 0.0
        %980 = vmatpush1.msra.mxu0 0.0
        %981 = vmatprep.subr.mxu0 0.0
        %982 = vmatpush1.msra.mxu0 0.0
        %983 = vmatprep.subr.mxu0 0.0
        %984 = vmatpush1.msra.mxu0 0.0
        %985 = vmatprep.subr.mxu0 0.0
        %986 = vmatpush1.msra.mxu0 0.0
        %987 = vmatprep.subr.mxu0 0.0
        %988 = vmatpush1.msra.mxu0 0.0
        %989 = vmatprep.subr.mxu0 0.0
        %990 = vmatpush1.msra.mxu0 0.0
        %991 = vmatprep.subr.mxu0 0.0
        %992 = vmatpush1.msra.mxu0 0.0
        %993 = vmatprep.subr.mxu0 0.0
        %994 = vmatpush1.msra.mxu0 0.0
        %995 = vmatprep.subr.mxu0 0.0
        %996 = vmatpush1.msra.mxu0 0.0
        %997 = vmatprep.subr.mxu0 0.0
        %998 = vmatpush1.msra.mxu0 0.0
        %999 = vmatprep.subr.mxu0 0.0
        %1000 = vmatpush1.msra.mxu0 0.0
        %1001 = vmatprep.subr.mxu0 0.0
        %1002 = vmatpush1.msra.mxu0 0.0
        %1003 = vmatprep.subr.mxu0 0.0
        %1004 = vmatpush1.msra.mxu0 0.0
        %1005 = vmatprep.subr.mxu0 0.0
        %1006 = vmatpush1.msra.mxu0 0.0
        %1007 = vmatprep.subr.mxu0 0.0
        %1008 = vmatpush1.msra.mxu0 0.0
        %1009 = vmatprep.subr.mxu0 0.0
        %1010 = vmatpush1.msra.mxu0 0.0
        %1011 = vmatprep.subr.mxu0 0.0
        %1012 = vmatpush1.msra.mxu0 0.0
        %1013 = vmatprep.subr.mxu0 0.0
        %1014 = vmatpush1.msra.mxu0 0.0
        %1015 = vmatprep.mubr.f32.mxu0 0.0
        %1016 = vmatmul.mubr.f32.gmra.mrb[0].mxu0 %v815
        %v1017 = vpop.f32.mrb[0].mxu0
        %v1018 = vadd.f32 %v776, %v1017
        %v1019 = vpop.f32.mrb[0].mxu0
        %v1020 = vadd.f32 %v776, %v1019
        %1021 = vmatprep.mubr.f32.mxu0 0.0
        %1022 = vmatmul.mubr.f32.gmra.mrb[0].mxu0 %v818
        %v1023 = vpop.f32.mrb[0].mxu0
        %v1024 = vadd.f32 %v781, %v1023
        %v1025 = vpop.f32.mrb[0].mxu0
        %v1026 = vadd.f32 %v781, %v1025
        %1027 = vmatprep.mubr.f32.mxu0 0.0
        %1028 = vmatmul.mubr.f32.gmra.mrb[0].mxu0 %v821
        %v1029 = vpop.f32.mrb[0].mxu0
        %v1030 = vadd.f32 %v786, %v1029
        %v1031 = vpop.f32.mrb[0].mxu0
        %v1032 = vadd.f32 %v786, %v1031
        %1033 = vmatprep.mubr.f32.mxu0 0.0
        %1034 = vmatmul.mubr.f32.gmra.mrb[0].mxu0 %v824
        %v1035 = vpop.f32.mrb[0].mxu0
        %v1036 = vadd.f32 %v791, %v1035
        %v1037 = vpop.f32.mrb[0].mxu0
        %v1038 = vadd.f32 %v791, %v1037
        %1039 = vmatprep.mubr.f32.mxu0 0.0
        %1040 = vmatmul.mubr.f32.gmra.mrb[0].mxu0 %v827
        %v1041 = vpop.f32.mrb[0].mxu0
        %v1042 = vadd.f32 %v796, %v1041
        %v1043 = vpop.f32.mrb[0].mxu0
        %v1044 = vadd.f32 %v796, %v1043
        %1045 = vmatprep.mubr.f32.mxu0 0.0
        %1046 = vmatmul.mubr.f32.gmra.mrb[0].mxu0 %v830
        %v1047 = vpop.f32.mrb[0].mxu0
        %v1048 = vadd.f32 %v801, %v1047
        %v1049 = vpop.f32.mrb[0].mxu0
        %v1050 = vadd.f32 %v801, %v1049
        %1051 = vmatprep.mubr.f32.mxu0 0.0
        %1052 = vmatmul.mubr.f32.gmra.mrb[0].mxu0 %v833
        %v1053 = vpop.f32.mrb[0].mxu0
        %v1054 = vadd.f32 %v806, %v1053
        %v1055 = vpop.f32.mrb[0].mxu0
        %v1056 = vadd.f32 %v806, %v1055
        %1057 = vmatprep.mubr.f32.mxu0 0.0
        %1058 = vmatmul.mubr.f32.gmra.mrb[0].mxu0 %v836
        %v1059 = vpop.f32.mrb[0].mxu0
        %v1060 = vadd.f32 %v811, %v1059
        %v1061 = vpop.f32.mrb[0].mxu0
        %v1062 = vadd.f32 %v811, %v1061
        %1063 = vdwg.mxu0
        %v1064 = vtanh.pop %v905
        %v1065 = vtanh.pop %v907
        %v1066 = vtanh.pop %v1018
        %v1067 = vtanh.pop %v1020
        %v1068 = vtanh.pop %v911
        %v1069 = vtanh.pop %v913
        %v1070 = vtanh.pop %v1024
        %v1071 = vtanh.pop %v1026
        %v1072 = vtanh.pop %v917
        %v1073 = vtanh.pop %v919
        %v1074 = vtanh.pop %v1030
        %v1075 = vtanh.pop %v1032
        %v1076 = vtanh.pop %v923
        %v1077 = vtanh.pop %v925
        %v1078 = vtanh.pop %v1036
        %v1079 = vtanh.pop %v1038
        %v1080 = vtanh.pop %v929
        %v1081 = vtanh.pop %v931
        %v1082 = vtanh.pop %v1042
        %v1083 = vtanh.pop %v1044
        %v1084 = vtanh.pop %v935
        %v1085 = vtanh.pop %v937
        %v1086 = vtanh.pop %v1048
        %v1087 = vtanh.pop %v1050
        %v1088 = vtanh.pop %v941
        %v1089 = vtanh.pop %v943
        %v1090 = vtanh.pop %v1054
        %v1091 = vtanh.pop %v1056
        %v1092 = vtanh.pop %v947
        %v1093 = vtanh.pop %v949
        %v1094 = vtanh.pop %v1060
        %v1095 = vtanh.pop %v1062
        %v1096 = vld [vmem:[%s5] sm:$0xff]
        %v1097 = vld [vmem:[%s5 + $0x8] sm:$0xff]
        %v1098 = vld [vmem:[%s5 + $0x10] sm:$0xff]
        %v1099 = vld [vmem:[%s5 + $0x18] sm:$0xff]
        %v1100 = vld [vmem:[%s5 + $0x20] sm:$0xff]
        %v1101 = vld [vmem:[%s5 + $0x28] sm:$0xff]
        %v1102 = vld [vmem:[%s5 + $0x30] sm:$0xff]
        %v1103 = vld [vmem:[%s5 + $0x38] sm:$0xff]
        %v1104 = vld [vmem:[%s6] sm:$0xff]
        %v1105 = vld [vmem:[%s6 + $0x8] sm:$0xff]
        %v1106 = vld [vmem:[%s6 + $0x10] sm:$0xff]
        %v1107 = vld [vmem:[%s6 + $0x18] sm:$0xff]
        %v1108 = vld [vmem:[%s6 + $0x20] sm:$0xff]
        %v1109 = vld [vmem:[%s6 + $0x28] sm:$0xff]
        %v1110 = vld [vmem:[%s6 + $0x30] sm:$0xff]
        %v1111 = vld [vmem:[%s6 + $0x38] sm:$0xff]
        %1113 = vset.pattern.permute.xlu0 0
        %1114 = vperm.xlu0 %1113, %v1104
        %v1115 = vpop.permute.xlu0 %1114
        %1118 = vset.pattern.permute.xlu0 0
        %1119 = vperm.xlu0 %1118, %v1105
        %v1120 = vpop.permute.xlu0 %1119
        %1123 = vset.pattern.permute.xlu0 0
        %1124 = vperm.xlu0 %1123, %v1106
        %v1125 = vpop.permute.xlu0 %1124
        %1128 = vset.pattern.permute.xlu0 0
        %1129 = vperm.xlu0 %1128, %v1107
        %v1130 = vpop.permute.xlu0 %1129
        %1133 = vset.pattern.permute.xlu0 0
        %1134 = vperm.xlu0 %1133, %v1108
        %v1135 = vpop.permute.xlu0 %1134
        %1138 = vset.pattern.permute.xlu0 0
        %1139 = vperm.xlu0 %1138, %v1109
        %v1140 = vpop.permute.xlu0 %1139
        %1143 = vset.pattern.permute.xlu0 0
        %1144 = vperm.xlu0 %1143, %v1110
        %v1145 = vpop.permute.xlu0 %1144
        %1148 = vset.pattern.permute.xlu0 0
        %1149 = vperm.xlu0 %1148, %v1111
        %v1150 = vpop.permute.xlu0 %1149
        %v1153 = vsel %vm813, %v1096, 0
        %v1156 = vsel %vm813, %v1097, 0
        %v1159 = vsel %vm813, %v1098, 0
        %v1162 = vsel %vm813, %v1099, 0
        %v1165 = vsel %vm813, %v1100, 0
        %v1168 = vsel %vm813, %v1101, 0
        %v1171 = vsel %vm813, %v1102, 0
        %v1174 = vsel %vm813, %v1103, 0
        %1176 = vmatprep.subr.mxu0 %v1065
        %1177 = vmatpush1.msra.mxu0 %v1064
        %1178 = vmatprep.subr.mxu0 %v1069
        %1179 = vmatpush1.msra.mxu0 %v1068
        %1180 = vmatprep.subr.mxu0 %v1073
        %1181 = vmatpush1.msra.mxu0 %v1072
        %1182 = vmatprep.subr.mxu0 %v1077
        %1183 = vmatpush1.msra.mxu0 %v1076
        %1184 = vmatprep.subr.mxu0 %v1081
        %1185 = vmatpush1.msra.mxu0 %v1080
        %1186 = vmatprep.subr.mxu0 %v1085
        %1187 = vmatpush1.msra.mxu0 %v1084
        %1188 = vmatprep.subr.mxu0 %v1089
        %1189 = vmatpush1.msra.mxu0 %v1088
        %1190 = vmatprep.subr.mxu0 %v1093
        %1191 = vmatpush1.msra.mxu0 %v1092
        %1192 = vmatprep.subr.mxu0 0.0
        %1193 = vmatpush1.msra.mxu0 0.0
        %1194 = vmatprep.subr.mxu0 0.0
        %1195 = vmatpush1.msra.mxu0 0.0
        %1196 = vmatprep.subr.mxu0 0.0
        %1197 = vmatpush1.msra.mxu0 0.0
        %1198 = vmatprep.subr.mxu0 0.0
        %1199 = vmatpush1.msra.mxu0 0.0
        %1200 = vmatprep.subr.mxu0 0.0
        %1201 = vmatpush1.msra.mxu0 0.0
        %1202 = vmatprep.subr.mxu0 0.0
        %1203 = vmatpush1.msra.mxu0 0.0
        %1204 = vmatprep.subr.mxu0 0.0
        %1205 = vmatpush1.msra.mxu0 0.0
        %1206 = vmatprep.subr.mxu0 0.0
        %1207 = vmatpush1.msra.mxu0 0.0
        %1208 = vmatprep.subr.mxu0 0.0
        %1209 = vmatpush1.msra.mxu0 0.0
        %1210 = vmatprep.subr.mxu0 0.0
        %1211 = vmatpush1.msra.mxu0 0.0
        %1212 = vmatprep.subr.mxu0 0.0
        %1213 = vmatpush1.msra.mxu0 0.0
        %1214 = vmatprep.subr.mxu0 0.0
        %1215 = vmatpush1.msra.mxu0 0.0
        %1216 = vmatprep.subr.mxu0 0.0
        %1217 = vmatpush1.msra.mxu0 0.0
        %1218 = vmatprep.subr.mxu0 0.0
        %1219 = vmatpush1.msra.mxu0 0.0
        %1220 = vmatprep.subr.mxu0 0.0
        %1221 = vmatpush1.msra.mxu0 0.0
        %1222 = vmatprep.subr.mxu0 0.0
        %1223 = vmatpush1.msra.mxu0 0.0
        %1224 = vmatprep.subr.mxu0 0.0
        %1225 = vmatpush1.msra.mxu0 0.0
        %1226 = vmatprep.subr.mxu0 0.0
        %1227 = vmatpush1.msra.mxu0 0.0
        %1228 = vmatprep.subr.mxu0 0.0
        %1229 = vmatpush1.msra.mxu0 0.0
        %1230 = vmatprep.subr.mxu0 0.0
        %1231 = vmatpush1.msra.mxu0 0.0
        %1232 = vmatprep.subr.mxu0 0.0
        %1233 = vmatpush1.msra.mxu0 0.0
        %1234 = vmatprep.subr.mxu0 0.0
        %1235 = vmatpush1.msra.mxu0 0.0
        %1236 = vmatprep.subr.mxu0 0.0
        %1237 = vmatpush1.msra.mxu0 0.0
        %1238 = vmatprep.subr.mxu0 0.0
        %1239 = vmatpush1.msra.mxu0 0.0
        %1240 = vmatprep.mubr.f32.mxu0 0.0
        %1241 = vmatmul.mubr.f32.gmra.mrb[0].mxu0 %v1153
        %v1242 = vpop.f32.mrb[0].mxu0
        %v1243 = vadd.f32 %v1115, %v1242
        %v1244 = vpop.f32.mrb[0].mxu0
        %v1245 = vadd.f32 %v1115, %v1244
        %1246 = vmatprep.mubr.f32.mxu0 0.0
        %1247 = vmatmul.mubr.f32.gmra.mrb[0].mxu0 %v1156
        %v1248 = vpop.f32.mrb[0].mxu0
        %v1249 = vadd.f32 %v1120, %v1248
        %v1250 = vpop.f32.mrb[0].mxu0
        %v1251 = vadd.f32 %v1120, %v1250
        %1252 = vmatprep.mubr.f32.mxu0 0.0
        %1253 = vmatmul.mubr.f32.gmra.mrb[0].mxu0 %v1159
        %v1254 = vpop.f32.mrb[0].mxu0
        %v1255 = vadd.f32 %v1125, %v1254
        %v1256 = vpop.f32.mrb[0].mxu0
        %v1257 = vadd.f32 %v1125, %v1256
        %1258 = vmatprep.mubr.f32.mxu0 0.0
        %1259 = vmatmul.mubr.f32.gmra.mrb[0].mxu0 %v1162
        %v1260 = vpop.f32.mrb[0].mxu0
        %v1261 = vadd.f32 %v1130, %v1260
        %v1262 = vpop.f32.mrb[0].mxu0
        %v1263 = vadd.f32 %v1130, %v1262
        %1264 = vmatprep.mubr.f32.mxu0 0.0
        %1265 = vmatmul.mubr.f32.gmra.mrb[0].mxu0 %v1165
        %v1266 = vpop.f32.mrb[0].mxu0
        %v1267 = vadd.f32 %v1135, %v1266
        %v1268 = vpop.f32.mrb[0].mxu0
        %v1269 = vadd.f32 %v1135, %v1268
        %1270 = vmatprep.mubr.f32.mxu0 0.0
        %1271 = vmatmul.mubr.f32.gmra.mrb[0].mxu0 %v1168
        %v1272 = vpop.f32.mrb[0].mxu0
        %v1273 = vadd.f32 %v1140, %v1272
        %v1274 = vpop.f32.mrb[0].mxu0
        %v1275 = vadd.f32 %v1140, %v1274
        %1276 = vmatprep.mubr.f32.mxu0 0.0
        %1277 = vmatmul.mubr.f32.gmra.mrb[0].mxu0 %v1171
        %v1278 = vpop.f32.mrb[0].mxu0
        %v1279 = vadd.f32 %v1145, %v1278
        %v1280 = vpop.f32.mrb[0].mxu0
        %v1281 = vadd.f32 %v1145, %v1280
        %1282 = vmatprep.mubr.f32.mxu0 0.0
        %1283 = vmatmul.mubr.f32.gmra.mrb[0].mxu0 %v1174
        %v1284 = vpop.f32.mrb[0].mxu0
        %v1285 = vadd.f32 %v1150, %v1284
        %v1286 = vpop.f32.mrb[0].mxu0
        %v1287 = vadd.f32 %v1150, %v1286
        %1288 = vdwg.mxu0
        %1289 = vmatprep.subr.mxu0 %v1067
        %1290 = vmatpush1.msra.mxu0 %v1066
        %1291 = vmatprep.subr.mxu0 %v1071
        %1292 = vmatpush1.msra.mxu0 %v1070
        %1293 = vmatprep.subr.mxu0 %v1075
        %1294 = vmatpush1.msra.mxu0 %v1074
        %1295 = vmatprep.subr.mxu0 %v1079
        %1296 = vmatpush1.msra.mxu0 %v1078
        %1297 = vmatprep.subr.mxu0 %v1083
        %1298 = vmatpush1.msra.mxu0 %v1082
        %1299 = vmatprep.subr.mxu0 %v1087
        %1300 = vmatpush1.msra.mxu0 %v1086
        %1301 = vmatprep.subr.mxu0 %v1091
        %1302 = vmatpush1.msra.mxu0 %v1090
        %1303 = vmatprep.subr.mxu0 %v1095
        %1304 = vmatpush1.msra.mxu0 %v1094
        %1305 = vmatprep.subr.mxu0 0.0
        %1306 = vmatpush1.msra.mxu0 0.0
        %1307 = vmatprep.subr.mxu0 0.0
        %1308 = vmatpush1.msra.mxu0 0.0
        %1309 = vmatprep.subr.mxu0 0.0
        %1310 = vmatpush1.msra.mxu0 0.0
        %1311 = vmatprep.subr.mxu0 0.0
        %1312 = vmatpush1.msra.mxu0 0.0
        %1313 = vmatprep.subr.mxu0 0.0
        %1314 = vmatpush1.msra.mxu0 0.0
        %1315 = vmatprep.subr.mxu0 0.0
        %1316 = vmatpush1.msra.mxu0 0.0
        %1317 = vmatprep.subr.mxu0 0.0
        %1318 = vmatpush1.msra.mxu0 0.0
        %1319 = vmatprep.subr.mxu0 0.0
        %1320 = vmatpush1.msra.mxu0 0.0
        %1321 = vmatprep.subr.mxu0 0.0
        %1322 = vmatpush1.msra.mxu0 0.0
        %1323 = vmatprep.subr.mxu0 0.0
        %1324 = vmatpush1.msra.mxu0 0.0
        %1325 = vmatprep.subr.mxu0 0.0
        %1326 = vmatpush1.msra.mxu0 0.0
        %1327 = vmatprep.subr.mxu0 0.0
        %1328 = vmatpush1.msra.mxu0 0.0
        %1329 = vmatprep.subr.mxu0 0.0
        %1330 = vmatpush1.msra.mxu0 0.0
        %1331 = vmatprep.subr.mxu0 0.0
        %1332 = vmatpush1.msra.mxu0 0.0
        %1333 = vmatprep.subr.mxu0 0.0
        %1334 = vmatpush1.msra.mxu0 0.0
        %1335 = vmatprep.subr.mxu0 0.0
        %1336 = vmatpush1.msra.mxu0 0.0
        %1337 = vmatprep.subr.mxu0 0.0
        %1338 = vmatpush1.msra.mxu0 0.0
        %1339 = vmatprep.subr.mxu0 0.0
        %1340 = vmatpush1.msra.mxu0 0.0
        %1341 = vmatprep.subr.mxu0 0.0
        %1342 = vmatpush1.msra.mxu0 0.0
        %1343 = vmatprep.subr.mxu0 0.0
        %1344 = vmatpush1.msra.mxu0 0.0
        %1345 = vmatprep.subr.mxu0 0.0
        %1346 = vmatpush1.msra.mxu0 0.0
        %1347 = vmatprep.subr.mxu0 0.0
        %1348 = vmatpush1.msra.mxu0 0.0
        %1349 = vmatprep.subr.mxu0 0.0
        %1350 = vmatpush1.msra.mxu0 0.0
        %1351 = vmatprep.subr.mxu0 0.0
        %1352 = vmatpush1.msra.mxu0 0.0
        %1353 = vmatprep.mubr.f32.mxu0 0.0
        %1354 = vmatmul.mubr.f32.gmra.mrb[0].mxu0 %v1153
        %v1355 = vpop.f32.mrb[0].mxu0
        %v1356 = vadd.f32 %v1115, %v1355
        %v1357 = vpop.f32.mrb[0].mxu0
        %v1358 = vadd.f32 %v1115, %v1357
        %1359 = vmatprep.mubr.f32.mxu0 0.0
        %1360 = vmatmul.mubr.f32.gmra.mrb[0].mxu0 %v1156
        %v1361 = vpop.f32.mrb[0].mxu0
        %v1362 = vadd.f32 %v1120, %v1361
        %v1363 = vpop.f32.mrb[0].mxu0
        %v1364 = vadd.f32 %v1120, %v1363
        %1365 = vmatprep.mubr.f32.mxu0 0.0
        %1366 = vmatmul.mubr.f32.gmra.mrb[0].mxu0 %v1159
        %v1367 = vpop.f32.mrb[0].mxu0
        %v1368 = vadd.f32 %v1125, %v1367
        %v1369 = vpop.f32.mrb[0].mxu0
        %v1370 = vadd.f32 %v1125, %v1369
        %1371 = vmatprep.mubr.f32.mxu0 0.0
        %1372 = vmatmul.mubr.f32.gmra.mrb[0].mxu0 %v1162
        %v1373 = vpop.f32.mrb[0].mxu0
        %v1374 = vadd.f32 %v1130, %v1373
        %v1375 = vpop.f32.mrb[0].mxu0
        %v1376 = vadd.f32 %v1130, %v1375
        %1377 = vmatprep.mubr.f32.mxu0 0.0
        %1378 = vmatmul.mubr.f32.gmra.mrb[0].mxu0 %v1165
        %v1379 = vpop.f32.mrb[0].mxu0
        %v1380 = vadd.f32 %v1135, %v1379
        %v1381 = vpop.f32.mrb[0].mxu0
        %v1382 = vadd.f32 %v1135, %v1381
        %1383 = vmatprep.mubr.f32.mxu0 0.0
        %1384 = vmatmul.mubr.f32.gmra.mrb[0].mxu0 %v1168
        %v1385 = vpop.f32.mrb[0].mxu0
        %v1386 = vadd.f32 %v1140, %v1385
        %v1387 = vpop.f32.mrb[0].mxu0
        %v1388 = vadd.f32 %v1140, %v1387
        %1389 = vmatprep.mubr.f32.mxu0 0.0
        %1390 = vmatmul.mubr.f32.gmra.mrb[0].mxu0 %v1171
        %v1391 = vpop.f32.mrb[0].mxu0
        %v1392 = vadd.f32 %v1145, %v1391
        %v1393 = vpop.f32.mrb[0].mxu0
        %v1394 = vadd.f32 %v1145, %v1393
        %1395 = vmatprep.mubr.f32.mxu0 0.0
        %1396 = vmatmul.mubr.f32.gmra.mrb[0].mxu0 %v1174
        %v1397 = vpop.f32.mrb[0].mxu0
        %v1398 = vadd.f32 %v1150, %v1397
        %v1399 = vpop.f32.mrb[0].mxu0
        %v1400 = vadd.f32 %v1150, %v1399
        %1401 = vdwg.mxu0
        %v1402 = vtanh.pop %v1243
        %v1403 = vtanh.pop %v1245
        %v1404 = vtanh.pop %v1356
        %v1405 = vtanh.pop %v1358
        %v1406 = vtanh.pop %v1249
        %v1407 = vtanh.pop %v1251
        %v1408 = vtanh.pop %v1362
        %v1409 = vtanh.pop %v1364
        %v1410 = vtanh.pop %v1255
        %v1411 = vtanh.pop %v1257
        %v1412 = vtanh.pop %v1368
        %v1413 = vtanh.pop %v1370
        %v1414 = vtanh.pop %v1261
        %v1415 = vtanh.pop %v1263
        %v1416 = vtanh.pop %v1374
        %v1417 = vtanh.pop %v1376
        %v1418 = vtanh.pop %v1267
        %v1419 = vtanh.pop %v1269
        %v1420 = vtanh.pop %v1380
        %v1421 = vtanh.pop %v1382
        %v1422 = vtanh.pop %v1273
        %v1423 = vtanh.pop %v1275
        %v1424 = vtanh.pop %v1386
        %v1425 = vtanh.pop %v1388
        %v1426 = vtanh.pop %v1279
        %v1427 = vtanh.pop %v1281
        %v1428 = vtanh.pop %v1392
        %v1429 = vtanh.pop %v1394
        %v1430 = vtanh.pop %v1285
        %v1431 = vtanh.pop %v1287
        %v1432 = vtanh.pop %v1398
        %v1433 = vtanh.pop %v1400
        %v1434 = vld [vmem:[%s7] sm:$0xff]
        %v1435 = vld [vmem:[%s7 + $0x8] sm:$0xff]
        %v1436 = vld [vmem:[%s7 + $0x10] sm:$0xff]
        %v1437 = vld [vmem:[%s7 + $0x18] sm:$0xff]
        %v1438 = vld [vmem:[%s7 + $0x20] sm:$0xff]
        %v1439 = vld [vmem:[%s7 + $0x28] sm:$0xff]
        %v1440 = vld [vmem:[%s7 + $0x30] sm:$0xff]
        %v1441 = vld [vmem:[%s7 + $0x38] sm:$0xff]
        %v1442 = vld [vmem:[%s8] sm:$0xff]
        %v1443 = vld [vmem:[%s8 + $0x8] sm:$0xff]
        %v1444 = vld [vmem:[%s8 + $0x10] sm:$0xff]
        %v1445 = vld [vmem:[%s8 + $0x18] sm:$0xff]
        %v1446 = vld [vmem:[%s8 + $0x20] sm:$0xff]
        %v1447 = vld [vmem:[%s8 + $0x28] sm:$0xff]
        %v1448 = vld [vmem:[%s8 + $0x30] sm:$0xff]
        %v1449 = vld [vmem:[%s8 + $0x38] sm:$0xff]
        %1451 = vset.pattern.permute.xlu0 0
        %1452 = vperm.xlu0 %1451, %v1442
        %v1453 = vpop.permute.xlu0 %1452
        %1456 = vset.pattern.permute.xlu0 0
        %1457 = vperm.xlu0 %1456, %v1443
        %v1458 = vpop.permute.xlu0 %1457
        %1461 = vset.pattern.permute.xlu0 0
        %1462 = vperm.xlu0 %1461, %v1444
        %v1463 = vpop.permute.xlu0 %1462
        %1466 = vset.pattern.permute.xlu0 0
        %1467 = vperm.xlu0 %1466, %v1445
        %v1468 = vpop.permute.xlu0 %1467
        %1471 = vset.pattern.permute.xlu0 0
        %1472 = vperm.xlu0 %1471, %v1446
        %v1473 = vpop.permute.xlu0 %1472
        %1476 = vset.pattern.permute.xlu0 0
        %1477 = vperm.xlu0 %1476, %v1447
        %v1478 = vpop.permute.xlu0 %1477
        %1481 = vset.pattern.permute.xlu0 0
        %1482 = vperm.xlu0 %1481, %v1448
        %v1483 = vpop.permute.xlu0 %1482
        %1486 = vset.pattern.permute.xlu0 0
        %1487 = vperm.xlu0 %1486, %v1449
        %v1488 = vpop.permute.xlu0 %1487
        %v1491 = vsel %vm813, %v1434, 0
        %v1494 = vsel %vm813, %v1435, 0
        %v1497 = vsel %vm813, %v1436, 0
        %v1500 = vsel %vm813, %v1437, 0
        %v1503 = vsel %vm813, %v1438, 0
        %v1506 = vsel %vm813, %v1439, 0
        %v1509 = vsel %vm813, %v1440, 0
        %v1512 = vsel %vm813, %v1441, 0
        %1514 = vmatprep.subr.mxu0 %v1403
        %1515 = vmatpush1.msra.mxu0 %v1402
        %1516 = vmatprep.subr.mxu0 %v1407
        %1517 = vmatpush1.msra.mxu0 %v1406
        %1518 = vmatprep.subr.mxu0 %v1411
        %1519 = vmatpush1.msra.mxu0 %v1410
        %1520 = vmatprep.subr.mxu0 %v1415
        %1521 = vmatpush1.msra.mxu0 %v1414
        %1522 = vmatprep.subr.mxu0 %v1419
        %1523 = vmatpush1.msra.mxu0 %v1418
        %1524 = vmatprep.subr.mxu0 %v1423
        %1525 = vmatpush1.msra.mxu0 %v1422
        %1526 = vmatprep.subr.mxu0 %v1427
        %1527 = vmatpush1.msra.mxu0 %v1426
        %1528 = vmatprep.subr.mxu0 %v1431
        %1529 = vmatpush1.msra.mxu0 %v1430
        %1530 = vmatprep.subr.mxu0 0.0
        %1531 = vmatpush1.msra.mxu0 0.0
        %1532 = vmatprep.subr.mxu0 0.0
        %1533 = vmatpush1.msra.mxu0 0.0
        %1534 = vmatprep.subr.mxu0 0.0
        %1535 = vmatpush1.msra.mxu0 0.0
        %1536 = vmatprep.subr.mxu0 0.0
        %1537 = vmatpush1.msra.mxu0 0.0
        %1538 = vmatprep.subr.mxu0 0.0
        %1539 = vmatpush1.msra.mxu0 0.0
        %1540 = vmatprep.subr.mxu0 0.0
        %1541 = vmatpush1.msra.mxu0 0.0
        %1542 = vmatprep.subr.mxu0 0.0
        %1543 = vmatpush1.msra.mxu0 0.0
        %1544 = vmatprep.subr.mxu0 0.0
        %1545 = vmatpush1.msra.mxu0 0.0
        %1546 = vmatprep.subr.mxu0 0.0
        %1547 = vmatpush1.msra.mxu0 0.0
        %1548 = vmatprep.subr.mxu0 0.0
        %1549 = vmatpush1.msra.mxu0 0.0
        %1550 = vmatprep.subr.mxu0 0.0
        %1551 = vmatpush1.msra.mxu0 0.0
        %1552 = vmatprep.subr.mxu0 0.0
        %1553 = vmatpush1.msra.mxu0 0.0
        %1554 = vmatprep.subr.mxu0 0.0
        %1555 = vmatpush1.msra.mxu0 0.0
        %1556 = vmatprep.subr.mxu0 0.0
        %1557 = vmatpush1.msra.mxu0 0.0
        %1558 = vmatprep.subr.mxu0 0.0
        %1559 = vmatpush1.msra.mxu0 0.0
        %1560 = vmatprep.subr.mxu0 0.0
        %1561 = vmatpush1.msra.mxu0 0.0
        %1562 = vmatprep.subr.mxu0 0.0
        %1563 = vmatpush1.msra.mxu0 0.0
        %1564 = vmatprep.subr.mxu0 0.0
        %1565 = vmatpush1.msra.mxu0 0.0
        %1566 = vmatprep.subr.mxu0 0.0
        %1567 = vmatpush1.msra.mxu0 0.0
        %1568 = vmatprep.subr.mxu0 0.0
        %1569 = vmatpush1.msra.mxu0 0.0
        %1570 = vmatprep.subr.mxu0 0.0
        %1571 = vmatpush1.msra.mxu0 0.0
        %1572 = vmatprep.subr.mxu0 0.0
        %1573 = vmatpush1.msra.mxu0 0.0
        %1574 = vmatprep.subr.mxu0 0.0
        %1575 = vmatpush1.msra.mxu0 0.0
        %1576 = vmatprep.subr.mxu0 0.0
        %1577 = vmatpush1.msra.mxu0 0.0
        %1578 = vmatprep.mubr.f32.mxu0 0.0
        %1579 = vmatmul.mubr.f32.gmra.mrb[0].mxu0 %v1491
        %v1580 = vpop.f32.mrb[0].mxu0
        %v1581 = vadd.f32 %v1453, %v1580
        %v1582 = vpop.f32.mrb[0].mxu0
        %v1583 = vadd.f32 %v1453, %v1582
        %1584 = vmatprep.mubr.f32.mxu0 0.0
        %1585 = vmatmul.mubr.f32.gmra.mrb[0].mxu0 %v1494
        %v1586 = vpop.f32.mrb[0].mxu0
        %v1587 = vadd.f32 %v1458, %v1586
        %v1588 = vpop.f32.mrb[0].mxu0
        %v1589 = vadd.f32 %v1458, %v1588
        %1590 = vmatprep.mubr.f32.mxu0 0.0
        %1591 = vmatmul.mubr.f32.gmra.mrb[0].mxu0 %v1497
        %v1592 = vpop.f32.mrb[0].mxu0
        %v1593 = vadd.f32 %v1463, %v1592
        %v1594 = vpop.f32.mrb[0].mxu0
        %v1595 = vadd.f32 %v1463, %v1594
        %1596 = vmatprep.mubr.f32.mxu0 0.0
        %1597 = vmatmul.mubr.f32.gmra.mrb[0].mxu0 %v1500
        %v1598 = vpop.f32.mrb[0].mxu0
        %v1599 = vadd.f32 %v1468, %v1598
        %v1600 = vpop.f32.mrb[0].mxu0
        %v1601 = vadd.f32 %v1468, %v1600
        %1602 = vmatprep.mubr.f32.mxu0 0.0
        %1603 = vmatmul.mubr.f32.gmra.mrb[0].mxu0 %v1503
        %v1604 = vpop.f32.mrb[0].mxu0
        %v1605 = vadd.f32 %v1473, %v1604
        %v1606 = vpop.f32.mrb[0].mxu0
        %v1607 = vadd.f32 %v1473, %v1606
        %1608 = vmatprep.mubr.f32.mxu0 0.0
        %1609 = vmatmul.mubr.f32.gmra.mrb[0].mxu0 %v1506
        %v1610 = vpop.f32.mrb[0].mxu0
        %v1611 = vadd.f32 %v1478, %v1610
        %v1612 = vpop.f32.mrb[0].mxu0
        %v1613 = vadd.f32 %v1478, %v1612
        %1614 = vmatprep.mubr.f32.mxu0 0.0
        %1615 = vmatmul.mubr.f32.gmra.mrb[0].mxu0 %v1509
        %v1616 = vpop.f32.mrb[0].mxu0
        %v1617 = vadd.f32 %v1483, %v1616
        %v1618 = vpop.f32.mrb[0].mxu0
        %v1619 = vadd.f32 %v1483, %v1618
        %1620 = vmatprep.mubr.f32.mxu0 0.0
        %1621 = vmatmul.mubr.f32.gmra.mrb[0].mxu0 %v1512
        %v1622 = vpop.f32.mrb[0].mxu0
        %v1623 = vadd.f32 %v1488, %v1622
        %v1624 = vpop.f32.mrb[0].mxu0
        %v1625 = vadd.f32 %v1488, %v1624
        %1626 = vdwg.mxu0
        %1627 = vmatprep.subr.mxu0 %v1405
        %1628 = vmatpush1.msra.mxu0 %v1404
        %1629 = vmatprep.subr.mxu0 %v1409
        %1630 = vmatpush1.msra.mxu0 %v1408
        %1631 = vmatprep.subr.mxu0 %v1413
        %1632 = vmatpush1.msra.mxu0 %v1412
        %1633 = vmatprep.subr.mxu0 %v1417
        %1634 = vmatpush1.msra.mxu0 %v1416
        %1635 = vmatprep.subr.mxu0 %v1421
        %1636 = vmatpush1.msra.mxu0 %v1420
        %1637 = vmatprep.subr.mxu0 %v1425
        %1638 = vmatpush1.msra.mxu0 %v1424
        %1639 = vmatprep.subr.mxu0 %v1429
        %1640 = vmatpush1.msra.mxu0 %v1428
        %1641 = vmatprep.subr.mxu0 %v1433
        %1642 = vmatpush1.msra.mxu0 %v1432
        %1643 = vmatprep.subr.mxu0 0.0
        %1644 = vmatpush1.msra.mxu0 0.0
        %1645 = vmatprep.subr.mxu0 0.0
        %1646 = vmatpush1.msra.mxu0 0.0
        %1647 = vmatprep.subr.mxu0 0.0
        %1648 = vmatpush1.msra.mxu0 0.0
        %1649 = vmatprep.subr.mxu0 0.0
        %1650 = vmatpush1.msra.mxu0 0.0
        %1651 = vmatprep.subr.mxu0 0.0
        %1652 = vmatpush1.msra.mxu0 0.0
        %1653 = vmatprep.subr.mxu0 0.0
        %1654 = vmatpush1.msra.mxu0 0.0
        %1655 = vmatprep.subr.mxu0 0.0
        %1656 = vmatpush1.msra.mxu0 0.0
        %1657 = vmatprep.subr.mxu0 0.0
        %1658 = vmatpush1.msra.mxu0 0.0
        %1659 = vmatprep.subr.mxu0 0.0
        %1660 = vmatpush1.msra.mxu0 0.0
        %1661 = vmatprep.subr.mxu0 0.0
        %1662 = vmatpush1.msra.mxu0 0.0
        %1663 = vmatprep.subr.mxu0 0.0
        %1664 = vmatpush1.msra.mxu0 0.0
        %1665 = vmatprep.subr.mxu0 0.0
        %1666 = vmatpush1.msra.mxu0 0.0
        %1667 = vmatprep.subr.mxu0 0.0
        %1668 = vmatpush1.msra.mxu0 0.0
        %1669 = vmatprep.subr.mxu0 0.0
        %1670 = vmatpush1.msra.mxu0 0.0
        %1671 = vmatprep.subr.mxu0 0.0
        %1672 = vmatpush1.msra.mxu0 0.0
        %1673 = vmatprep.subr.mxu0 0.0
        %1674 = vmatpush1.msra.mxu0 0.0
        %1675 = vmatprep.subr.mxu0 0.0
        %1676 = vmatpush1.msra.mxu0 0.0
        %1677 = vmatprep.subr.mxu0 0.0
        %1678 = vmatpush1.msra.mxu0 0.0
        %1679 = vmatprep.subr.mxu0 0.0
        %1680 = vmatpush1.msra.mxu0 0.0
        %1681 = vmatprep.subr.mxu0 0.0
        %1682 = vmatpush1.msra.mxu0 0.0
        %1683 = vmatprep.subr.mxu0 0.0
        %1684 = vmatpush1.msra.mxu0 0.0
        %1685 = vmatprep.subr.mxu0 0.0
        %1686 = vmatpush1.msra.mxu0 0.0
        %1687 = vmatprep.subr.mxu0 0.0
        %1688 = vmatpush1.msra.mxu0 0.0
        %1689 = vmatprep.subr.mxu0 0.0
        %1690 = vmatpush1.msra.mxu0 0.0
        %1691 = vmatprep.mubr.f32.mxu0 0.0
        %1692 = vmatmul.mubr.f32.gmra.mrb[0].mxu0 %v1491
        %v1693 = vpop.f32.mrb[0].mxu0
        %v1694 = vadd.f32 %v1453, %v1693
        %v1695 = vpop.f32.mrb[0].mxu0
        %v1696 = vadd.f32 %v1453, %v1695
        %1697 = vmatprep.mubr.f32.mxu0 0.0
        %1698 = vmatmul.mubr.f32.gmra.mrb[0].mxu0 %v1494
        %v1699 = vpop.f32.mrb[0].mxu0
        %v1700 = vadd.f32 %v1458, %v1699
        %v1701 = vpop.f32.mrb[0].mxu0
        %v1702 = vadd.f32 %v1458, %v1701
        %1703 = vmatprep.mubr.f32.mxu0 0.0
        %1704 = vmatmul.mubr.f32.gmra.mrb[0].mxu0 %v1497
        %v1705 = vpop.f32.mrb[0].mxu0
        %v1706 = vadd.f32 %v1463, %v1705
        %v1707 = vpop.f32.mrb[0].mxu0
        %v1708 = vadd.f32 %v1463, %v1707
        %1709 = vmatprep.mubr.f32.mxu0 0.0
        %1710 = vmatmul.mubr.f32.gmra.mrb[0].mxu0 %v1500
        %v1711 = vpop.f32.mrb[0].mxu0
        %v1712 = vadd.f32 %v1468, %v1711
        %v1713 = vpop.f32.mrb[0].mxu0
        %v1714 = vadd.f32 %v1468, %v1713
        %1715 = vmatprep.mubr.f32.mxu0 0.0
        %1716 = vmatmul.mubr.f32.gmra.mrb[0].mxu0 %v1503
        %v1717 = vpop.f32.mrb[0].mxu0
        %v1718 = vadd.f32 %v1473, %v1717
        %v1719 = vpop.f32.mrb[0].mxu0
        %v1720 = vadd.f32 %v1473, %v1719
        %1721 = vmatprep.mubr.f32.mxu0 0.0
        %1722 = vmatmul.mubr.f32.gmra.mrb[0].mxu0 %v1506
        %v1723 = vpop.f32.mrb[0].mxu0
        %v1724 = vadd.f32 %v1478, %v1723
        %v1725 = vpop.f32.mrb[0].mxu0
        %v1726 = vadd.f32 %v1478, %v1725
        %1727 = vmatprep.mubr.f32.mxu0 0.0
        %1728 = vmatmul.mubr.f32.gmra.mrb[0].mxu0 %v1509
        %v1729 = vpop.f32.mrb[0].mxu0
        %v1730 = vadd.f32 %v1483, %v1729
        %v1731 = vpop.f32.mrb[0].mxu0
        %v1732 = vadd.f32 %v1483, %v1731
        %1733 = vmatprep.mubr.f32.mxu0 0.0
        %1734 = vmatmul.mubr.f32.gmra.mrb[0].mxu0 %v1512
        %v1735 = vpop.f32.mrb[0].mxu0
        %v1736 = vadd.f32 %v1488, %v1735
        %v1737 = vpop.f32.mrb[0].mxu0
        %v1738 = vadd.f32 %v1488, %v1737
        %1739 = vdwg.mxu0
        %v1740 = vtanh.pop %v1581
        %v1741 = vtanh.pop %v1583
        %v1742 = vtanh.pop %v1694
        %v1743 = vtanh.pop %v1696
        %v1744 = vtanh.pop %v1587
        %v1745 = vtanh.pop %v1589
        %v1746 = vtanh.pop %v1700
        %v1747 = vtanh.pop %v1702
        %v1748 = vtanh.pop %v1593
        %v1749 = vtanh.pop %v1595
        %v1750 = vtanh.pop %v1706
        %v1751 = vtanh.pop %v1708
        %v1752 = vtanh.pop %v1599
        %v1753 = vtanh.pop %v1601
        %v1754 = vtanh.pop %v1712
        %v1755 = vtanh.pop %v1714
        %v1756 = vtanh.pop %v1605
        %v1757 = vtanh.pop %v1607
        %v1758 = vtanh.pop %v1718
        %v1759 = vtanh.pop %v1720
        %v1760 = vtanh.pop %v1611
        %v1761 = vtanh.pop %v1613
        %v1762 = vtanh.pop %v1724
        %v1763 = vtanh.pop %v1726
        %v1764 = vtanh.pop %v1617
        %v1765 = vtanh.pop %v1619
        %v1766 = vtanh.pop %v1730
        %v1767 = vtanh.pop %v1732
        %v1768 = vtanh.pop %v1623
        %v1769 = vtanh.pop %v1625
        %v1770 = vtanh.pop %v1736
        %v1771 = vtanh.pop %v1738
        %v1772 = vld [vmem:[%s9] sm:$0xff]
        %v1773 = vld [vmem:[%s9 + $0x8] sm:$0xff]
        %v1774 = vld [vmem:[%s9 + $0x10] sm:$0xff]
        %v1775 = vld [vmem:[%s9 + $0x18] sm:$0xff]
        %v1776 = vld [vmem:[%s9 + $0x20] sm:$0xff]
        %v1777 = vld [vmem:[%s9 + $0x28] sm:$0xff]
        %v1778 = vld [vmem:[%s9 + $0x30] sm:$0xff]
        %v1779 = vld [vmem:[%s9 + $0x38] sm:$0xff]
        %1781 = vset.pattern.permute.xlu0 0
        %1782 = vperm.xlu0 %1781, %v1772
        %v1783 = vpop.permute.xlu0 %1782
        %1786 = vset.pattern.permute.xlu0 0
        %1787 = vperm.xlu0 %1786, %v1773
        %v1788 = vpop.permute.xlu0 %1787
        %1791 = vset.pattern.permute.xlu0 0
        %1792 = vperm.xlu0 %1791, %v1774
        %v1793 = vpop.permute.xlu0 %1792
        %1796 = vset.pattern.permute.xlu0 0
        %1797 = vperm.xlu0 %1796, %v1775
        %v1798 = vpop.permute.xlu0 %1797
        %1801 = vset.pattern.permute.xlu0 0
        %1802 = vperm.xlu0 %1801, %v1776
        %v1803 = vpop.permute.xlu0 %1802
        %1806 = vset.pattern.permute.xlu0 0
        %1807 = vperm.xlu0 %1806, %v1777
        %v1808 = vpop.permute.xlu0 %1807
        %1811 = vset.pattern.permute.xlu0 0
        %1812 = vperm.xlu0 %1811, %v1778
        %v1813 = vpop.permute.xlu0 %1812
        %1816 = vset.pattern.permute.xlu0 0
        %1817 = vperm.xlu0 %1816, %v1779
        %v1818 = vpop.permute.xlu0 %1817
        %v1820 = vmul.f32 %v1740, %v1783
        %v1821 = vmul.f32 %v1741, %v1783
        %v1822 = vmul.f32 %v1742, %v1783
        %v1823 = vmul.f32 %v1743, %v1783
        %v1824 = vmul.f32 %v1744, %v1788
        %v1825 = vmul.f32 %v1745, %v1788
        %v1826 = vmul.f32 %v1746, %v1788
        %v1827 = vmul.f32 %v1747, %v1788
        %v1828 = vmul.f32 %v1748, %v1793
        %v1829 = vmul.f32 %v1749, %v1793
        %v1830 = vmul.f32 %v1750, %v1793
        %v1831 = vmul.f32 %v1751, %v1793
        %v1832 = vmul.f32 %v1752, %v1798
        %v1833 = vmul.f32 %v1753, %v1798
        %v1834 = vmul.f32 %v1754, %v1798
        %v1835 = vmul.f32 %v1755, %v1798
        %v1836 = vmul.f32 %v1756, %v1803
        %v1837 = vmul.f32 %v1757, %v1803
        %v1838 = vmul.f32 %v1758, %v1803
        %v1839 = vmul.f32 %v1759, %v1803
        %v1840 = vmul.f32 %v1760, %v1808
        %v1841 = vmul.f32 %v1761, %v1808
        %v1842 = vmul.f32 %v1762, %v1808
        %v1843 = vmul.f32 %v1763, %v1808
        %v1844 = vmul.f32 %v1764, %v1813
        %v1845 = vmul.f32 %v1765, %v1813
        %v1846 = vmul.f32 %v1766, %v1813
        %v1847 = vmul.f32 %v1767, %v1813
        %v1848 = vmul.f32 %v1768, %v1818
        %v1849 = vmul.f32 %v1769, %v1818
        %v1850 = vmul.f32 %v1770, %v1818
        %v1851 = vmul.f32 %v1771, %v1818
        %v1852 = vadd.f32 %v1820, %v1824
        %v1853 = vadd.f32 %v1852, %v1828
        %v1854 = vadd.f32 %v1853, %v1832
        %v1855 = vadd.f32 %v1854, %v1836
        %v1856 = vadd.f32 %v1855, %v1840
        %v1857 = vadd.f32 %v1856, %v1844
        %v1858 = vadd.f32 %v1857, %v1848
        %v1859 = vrot.slane %v1858, 4
        %v1860 = vadd.f32 %v1858, %v1859
        %v1861 = vrot.slane %v1860, 2
        %v1862 = vadd.f32 %v1860, %v1861
        %v1863 = vrot.slane %v1862, 1
        %v1864 = vadd.f32 %v1862, %v1863
        %v1865 = vadd.f32 %v1821, %v1825
        %v1866 = vadd.f32 %v1865, %v1829
        %v1867 = vadd.f32 %v1866, %v1833
        %v1868 = vadd.f32 %v1867, %v1837
        %v1869 = vadd.f32 %v1868, %v1841
        %v1870 = vadd.f32 %v1869, %v1845
        %v1871 = vadd.f32 %v1870, %v1849
        %v1872 = vrot.slane %v1871, 4
        %v1873 = vadd.f32 %v1871, %v1872
        %v1874 = vrot.slane %v1873, 2
        %v1875 = vadd.f32 %v1873, %v1874
        %v1876 = vrot.slane %v1875, 1
        %v1877 = vadd.f32 %v1875, %v1876
        %v1878 = vadd.f32 %v1822, %v1826
        %v1879 = vadd.f32 %v1878, %v1830
        %v1880 = vadd.f32 %v1879, %v1834
        %v1881 = vadd.f32 %v1880, %v1838
        %v1882 = vadd.f32 %v1881, %v1842
        %v1883 = vadd.f32 %v1882, %v1846
        %v1884 = vadd.f32 %v1883, %v1850
        %v1885 = vrot.slane %v1884, 4
        %v1886 = vadd.f32 %v1884, %v1885
        %v1887 = vrot.slane %v1886, 2
        %v1888 = vadd.f32 %v1886, %v1887
        %v1889 = vrot.slane %v1888, 1
        %v1890 = vadd.f32 %v1888, %v1889
        %v1891 = vadd.f32 %v1823, %v1827
        %v1892 = vadd.f32 %v1891, %v1831
        %v1893 = vadd.f32 %v1892, %v1835
        %v1894 = vadd.f32 %v1893, %v1839
        %v1895 = vadd.f32 %v1894, %v1843
        %v1896 = vadd.f32 %v1895, %v1847
        %v1897 = vadd.f32 %v1896, %v1851
        %v1898 = vrot.slane %v1897, 4
        %v1899 = vadd.f32 %v1897, %v1898
        %v1900 = vrot.slane %v1899, 2
        %v1901 = vadd.f32 %v1899, %v1900
        %v1902 = vrot.slane %v1901, 1
        %v1903 = vadd.f32 %v1901, %v1902
        %v1904 = vld [vmem:[#allocation2] sm:$0x1]
        %1906 = vset.pattern.permute.xlu0 0
        %1907 = vperm.xlu0 %1906, %v1904
        %v1908 = vpop.permute.xlu0 %1907
        %v1910 = vlaneseq
        %v1911 = vshrl.u32 %v1910, 7
        %v1912 = vsub.s32 0, %v1911
        %v1913 = vrot.slane %v1908, %v1912
        %v1914 = vadd.f32 %v1864, %v1913
        %v1915 = vadd.f32 %v1877, %v1913
        %v1916 = vadd.f32 %v1890, %v1913
        %v1917 = vadd.f32 %v1903, %v1913
        %v1922 = vcombine.low %v1914, %v1915
        %v1923 = vcombine.low %v1916, %v1917
        %v1925 = vunpack.c.l.s4 1966171168
        %v1926 = vunpack.c.0.s8 %v1925
        %v1927 = vlaneseq
        %v1928 = vshrl.u32 %v1927, 7
        %v1929 = vsub.s32 %v1926, %v1928
        %v1930 = vrot.slane %v1922, %v1929
        %v1932 = vunpack.c.l.s4 1966171168
        %v1933 = vunpack.c.0.s8 %v1932
        %v1934 = vlaneseq
        %v1935 = vshrl.u32 %v1934, 7
        %v1936 = vsub.s32 %v1933, %v1935
        %v1937 = vrot.slane %v1923, %v1936
        %v1938 = vcombine.low %v1930, %v1937
        %v1940 = vunpack.c.l.s4 1966171168
        %v1941 = vunpack.c.0.s8 %v1940
        %v1942 = vlaneseq
        %v1943 = vshrl.u32 %v1942, 7
        %v1944 = vsub.s32 %v1941, %v1943
        %v1945 = vrot.slane %v1938, %v1944
        %v1947 = vlaneseq
        %vm1948 = vcmp.ge.s32.totalorder %v1947, 0
        %vm1949 = vcmp.lt.s32.totalorder %v1947, 512
        %vm1950 = vmand %vm1948, %vm1949
        %1951 = vst.msk [vmem:[%s382] sm:$0xf] %vm1950, %v1945
        %s1952 = sand.u32 %s271, 1
        %s1953 = scalar_lea.sflag [#allocation4], %s1952
        %s1954 = sand.u32 %s271, 1
        %s1955 = smul.addr %s1954, 4
        %s1956 = scalar_lea.vmem [#allocation3], %s1955
        // Predicated region
        $region65: #{tpu_custom_call.1} parent=63 // pred_check
          %p1957 = pneg %p281
        $region66: #{tpu_custom_call.1} parent=63 // pred_check_branch
          %1959 = sbr.rel (%p1957) target = $region68
        $region67: #{tpu_custom_call.1} parent=63 // pred_region
          %s1960 = smul.u32 4, %s27
          %s1962 = ssub.s32 64, 64
          %1963 = vsyncadd %s1953, %s1962
          %s1964 = smul.addr %s1960, 16
          %s1965 = scalar_lea.hbm %s11, %s1964
          %s1967 = sshll.u32 %s1956, 4
          %s1968 = int_to_ptr.vmem [resolvable:$true] %s1967
          %1970 = dma.vmem_to_hbm [thread:$0]  %s1968, 64, %s1965, %s1953
        $region68: #{tpu_custom_call.1} parent=63 // pred_fallthru
          _
      $region64: #{tpu_custom_call.1} parent=5 // pred_fallthru
        _
      %p1971 = scmp.le.s32.totalorder 2, %s22
      // Predicated region
      $region69: #{tpu_custom_call.1} parent=5 // pred_check
        %p1972 = pneg %p1971
      $region70: #{tpu_custom_call.1} parent=5 // pred_check_branch
        %1974 = sbr.rel (%p1972) target = $region72
      $region71: #{tpu_custom_call.1} parent=5 // pred_region
        %s1975 = ssub.s32 %s22, 2
        // Predicated region
        $region73: #{tpu_custom_call.1} parent=71 // pred_check
          %p1976 = pneg %p287
        $region74: #{tpu_custom_call.1} parent=71 // pred_check_branch
          %1978 = sbr.rel (%p1976) target = $region76
        $region75: #{tpu_custom_call.1} parent=71 // pred_region
          %s1979 = sand.u32 %s272, 1
          %s1980 = scalar_lea.sflag [#allocation4], %s1979
          %s1981 = sand.u32 %s272, 1
          %s1982 = smul.addr %s1981, 4
          %s1983 = scalar_lea.vmem [#allocation3], %s1982
          %1984 = dma.done %s1980, 64
        $region76: #{tpu_custom_call.1} parent=71 // pred_fallthru
          _
      $region72: #{tpu_custom_call.1} parent=5 // pred_fallthru
        _
    $region6: #{tpu_custom_call.1} parent=1 // loop_footer
      %s26 = sadd.s32 1, %s22
    $region7: #{tpu_custom_call.1} parent=1 // loop_footer_branch
      %21 = sbr.rel target = $region3
    $region8: #{tpu_custom_call.1} parent=1 // loop_exit
      _
    %1985 = vsyncpa [#allocation4], 1
    %s1986 = scalar_lea.sflag [#allocation4], 1
    %1987 = vsyncpa %s1986, 1

</llo_original>
